<compile_context>
chip_gen: v6e
topology: v6e:2x2x1
jax: 0.10.0
libtpu: 0.0.40
codegen_flags: <defaults>
</compile_context>

<pallas_src>
import functools

import jax
import jax.numpy as jnp
from jax import lax
from jax.experimental import pallas as pl
from jax.experimental.pallas import tpu as pltpu


def _sort_kernel(n_valid, descending, x_ref, g_ref, sorted_ref, idx_ref):
    n_pad, td = x_ref.shape
    x = x_ref[...]                                   # (n_pad, td) f32 node values (padded rows = 0)
    g = g_ref[...]                                   # (n_pad, td) f32 graph id per node, lane-dense

    row = lax.broadcasted_iota(jnp.int32, (n_pad, td), 0)
    valid = row < n_valid

    neg_inf = jnp.float32(-jnp.inf)
    pos_inf = jnp.float32(jnp.inf)

    # Per-column step = max - min + 1 over the valid rows only.
    x_max = jnp.max(jnp.where(valid, x, neg_inf), axis=0, keepdims=True)
    x_min = jnp.min(jnp.where(valid, x, pos_inf), axis=0, keepdims=True)
    step = x_max - x_min + 1.0
    if descending:
        step = -step

    off = g * step                                    # graph offset, reused twice

    # Sort keys: graph-offset values; padded rows get a sentinel that sorts last.
    pad_key = neg_inf if descending else pos_inf
    key = jnp.where(valid, x + off, pad_key)          # (n_pad, td) f32
    idx = row                                         # (n_pad, td) i32 original row index

    # Bitonic sorting network along axis 0 (nodes).  The comparator is a strict total
    # order -- value (flipped for descending) with tie-break on the original index --
    # so the result is identical to a stable sort.
    k = 2
    while k <= n_pad:
        j = k // 2
        while j >= 1:
            # Partner of row i is row (i ^ j): fetch via two sublane rolls + select.
            is_low = (row & j) == 0
            pk = jnp.where(is_low,
                           pltpu.roll(key, shift=n_pad - j, axis=0),   # key[i + j]
                           pltpu.roll(key, shift=j, axis=0))           # key[i - j]
            pi = jnp.where(is_low,
                           pltpu.roll(idx, shift=n_pad - j, axis=0),
                           pltpu.roll(idx, shift=j, axis=0))
            if descending:
                precedes = (key > pk) | ((key == pk) & (idx < pi))
            else:
                precedes = (key < pk) | ((key == pk) & (idx < pi))
            desc_blk = (row & k) != 0
            # This row should hold the "preceding" element of its pair iff it is the lower
            # index of an ascending block or the upper index of a descending block.
            want_first = jnp.logical_xor(is_low, desc_blk)
            take_partner = jnp.logical_xor(want_first, precedes)
            key = jnp.where(take_partner, pk, key)
            idx = jnp.where(take_partner, pi, idx)
            j //= 2
        k *= 2

    # Positional un-offset, exactly as `sorted - input2graph * step` in the torch code.
    sorted_ref[...] = key - off
    idx_ref[...] = idx


def sort_readout(x, node2graph, descending=False, max_tile_d=512):
    """Sort readout.  x: (N, D) float, node2graph: (N,) int.

    Returns (sorted (N, D) float32, index (N, D) int32)."""
    n, d = x.shape
    x = x.astype(jnp.float32)

    # Pad nodes to a power of two (>= 8 sublanes); pad features to a lane-dense multiple of 128.
    n_pad = max(8, 1 << (n - 1).bit_length()) if n > 1 else 8
    d_pad = pl.cdiv(d, 128) * 128

    # Lane tile: the largest multiple of 128 that divides d_pad, capped by max_tile_d and a
    # rough VMEM budget (~2 MiB per live (n_pad, td) f32 array; ~a dozen such arrays live).
    td = 128
    for cand in range(max_tile_d, 127, -128):
        if d_pad % cand == 0 and n_pad * cand * 4 <= (2 << 20):
            td = cand
            break

    x_p = jnp.pad(x, ((0, n_pad - n), (0, d_pad - d)))
    g_p = jnp.pad(node2graph.astype(jnp.float32), (0, n_pad - n))
    g_full = jnp.broadcast_to(g_p[:, None], (n_pad, td))   # lane-dense graph ids, shared by all D tiles

    kernel = functools.partial(_sort_kernel, n, descending)
    sorted_p, idx_p = pl.pallas_call(
        kernel,
        out_shape=(
            jax.ShapeDtypeStruct((n_pad, d_pad), jnp.float32),
            jax.ShapeDtypeStruct((n_pad, d_pad), jnp.int32),
        ),
        grid=(d_pad // td,),
        in_specs=[
            pl.BlockSpec((n_pad, td), lambda j: (0, j)),
            pl.BlockSpec((n_pad, td), lambda j: (0, 0)),   # constant block -> DMA'd only once
        ],
        out_specs=(
            pl.BlockSpec((n_pad, td), lambda j: (0, j)),
            pl.BlockSpec((n_pad, td), lambda j: (0, j)),
        ),
        compiler_params=pltpu.CompilerParams(
            dimension_semantics=("parallel",),
        ),
    )(x_p, g_full)
    return sorted_p[:n, :d], idx_p[:n, :d]


def _reference(x, node2graph, descending):
    g = node2graph.astype(jnp.float32)[:, None]
    step = x.max(0) - x.min(0) + 1.0
    if descending:
        step = -step
    xo = x + g * step
    order = jnp.argsort(-xo if descending else xo, axis=0)     # stable
    sorted_ref = jnp.take_along_axis(xo, order, axis=0) - g * step
    return sorted_ref, order.astype(jnp.int32)


if __name__ == "__main__":
    key = jax.random.PRNGKey(0)

    cases = [
        # (N, D, per-graph node counts)
        (24, 256, [7, 9, 8]),       # single lane tile (td=256)
        (37, 640, [12, 10, 15]),    # multi-tile grid (td=128, 5 tiles), non-pow2 N
    ]

    for (N, D, sizes) in cases:
        key, sub = jax.random.split(key)
        x = jax.random.normal(sub, (N, D), dtype=jnp.float32)
        node2graph = jnp.concatenate(
            [jnp.full((s,), i, dtype=jnp.int32) for i, s in enumerate(sizes)])

        for descending in (False, True):
            sorted_x, idx = sort_readout(x, node2graph, descending=descending)
            jax.block_until_ready((sorted_x, idx))

            sorted_ref, order_ref = _reference(x, node2graph, descending)
            assert jnp.allclose(sorted_x, sorted_ref, atol=1e-5), "sorted values mismatch"
            assert jnp.array_equal(idx, order_ref), "sorted indices mismatch"

    print("KERNEL_OK")
</pallas_src>

<mosaic_0001>
module attributes {stable_mosaic.version = 11 : i64} {
  func.func @_sort_kernel(%arg0: i32, %arg1: memref<32x256xf32, #tpu.memory_space<vmem>>, %arg2: memref<32x256xf32, #tpu.memory_space<vmem>>, %arg3: memref<32x256xf32, #tpu.memory_space<vmem>>, %arg4: memref<32x256xi32, #tpu.memory_space<vmem>>) attributes {dimension_semantics = [#tpu.dimension_semantics<parallel>], iteration_bounds = array<i64: 1>, scalar_prefetch = 0 : i64, scratch_operands = 0 : i64, tpu.core_type = #tpu.core_type<tc>, window_params = [{transform_indices = @transform_0, window_bounds = array<i64: 32, 256>}, {pipeline_mode = #tpu.pipeline_mode<synchronous>, transform_indices = @transform_1, window_bounds = array<i64: 32, 256>}, {transform_indices = @transform_2, window_bounds = array<i64: 32, 256>}, {transform_indices = @transform_3, window_bounds = array<i64: 32, 256>}]} {
    %c0 = arith.constant 0 : index
    %c0_0 = arith.constant 0 : index
    %0 = vector.load %arg1[%c0, %c0_0] : memref<32x256xf32, #tpu.memory_space<vmem>>, vector<32x256xf32>
    %c0_1 = arith.constant 0 : index
    %c0_2 = arith.constant 0 : index
    %1 = vector.load %arg2[%c0_1, %c0_2] : memref<32x256xf32, #tpu.memory_space<vmem>>, vector<32x256xf32>
    %2 = tpu.iota {dimensions = array<i32: 0>} : vector<32x256xi32>
    %c24_i32 = arith.constant 24 : i32
    %3 = vector.broadcast %c24_i32 : i32 to vector<32x256xi32>
    %4 = arith.cmpi slt, %2, %3 : vector<32x256xi32>
    %cst = arith.constant 0xFF800000 : f32
    %5 = vector.broadcast %cst : f32 to vector<32x256xf32>
    %6 = arith.select %4, %0, %5 : vector<32x256xi1>, vector<32x256xf32>
    %cst_3 = arith.constant dense<0xFF800000> : vector<256xf32>
    %7 = vector.multi_reduction <maximumf>, %6, %cst_3 [0] : vector<32x256xf32> to vector<256xf32>
    %8 = vector.shape_cast %7 : vector<256xf32> to vector<1x256xf32>
    %cst_4 = arith.constant 0x7F800000 : f32
    %9 = vector.broadcast %cst_4 : f32 to vector<32x256xf32>
    %10 = arith.select %4, %0, %9 : vector<32x256xi1>, vector<32x256xf32>
    %cst_5 = arith.constant dense<0x7F800000> : vector<256xf32>
    %11 = vector.multi_reduction <minimumf>, %10, %cst_5 [0] : vector<32x256xf32> to vector<256xf32>
    %12 = vector.shape_cast %11 : vector<256xf32> to vector<1x256xf32>
    %13 = arith.subf %8, %12 : vector<1x256xf32>
    %cst_6 = arith.constant 1.000000e+00 : f32
    %14 = vector.broadcast %cst_6 : f32 to vector<1x256xf32>
    %15 = arith.addf %13, %14 : vector<1x256xf32>
    %16 = vector.broadcast %15 : vector<1x256xf32> to vector<32x256xf32>
    %17 = arith.mulf %1, %16 : vector<32x256xf32>
    %18 = arith.addf %0, %17 : vector<32x256xf32>
    %cst_7 = arith.constant 0x7F800000 : f32
    %19 = vector.broadcast %cst_7 : f32 to vector<32x256xf32>
    %20 = arith.select %4, %18, %19 : vector<32x256xi1>, vector<32x256xf32>
    %c1_i32 = arith.constant 1 : i32
    %21 = vector.broadcast %c1_i32 : i32 to vector<32x256xi32>
    %22 = arith.andi %2, %21 : vector<32x256xi32>
    %c0_i32 = arith.constant 0 : i32
    %23 = vector.broadcast %c0_i32 : i32 to vector<32x256xi32>
    %24 = arith.cmpi eq, %22, %23 : vector<32x256xi32>
    %c31_i32 = arith.constant 31 : i32
    %25 = tpu.dynamic_rotate %20 by %c31_i32 dim 0 : vector<32x256xf32>, i32 -> vector<32x256xf32>
    %c1_i32_8 = arith.constant 1 : i32
    %26 = tpu.dynamic_rotate %20 by %c1_i32_8 dim 0 : vector<32x256xf32>, i32 -> vector<32x256xf32>
    %27 = arith.select %24, %25, %26 : vector<32x256xi1>, vector<32x256xf32>
    %c31_i32_9 = arith.constant 31 : i32
    %28 = tpu.dynamic_rotate %2 by %c31_i32_9 dim 0 : vector<32x256xi32>, i32 -> vector<32x256xi32>
    %c1_i32_10 = arith.constant 1 : i32
    %29 = tpu.dynamic_rotate %2 by %c1_i32_10 dim 0 : vector<32x256xi32>, i32 -> vector<32x256xi32>
    %30 = arith.select %24, %28, %29 : vector<32x256xi1>, vector<32x256xi32>
    %31 = arith.cmpf olt, %20, %27 : vector<32x256xf32>
    %32 = arith.cmpf oeq, %20, %27 : vector<32x256xf32>
    %33 = arith.cmpi slt, %2, %30 : vector<32x256xi32>
    %34 = arith.andi %32, %33 : vector<32x256xi1>
    %35 = arith.ori %31, %34 : vector<32x256xi1>
    %c2_i32 = arith.constant 2 : i32
    %36 = vector.broadcast %c2_i32 : i32 to vector<32x256xi32>
    %37 = arith.andi %2, %36 : vector<32x256xi32>
    %c0_i32_11 = arith.constant 0 : i32
    %38 = vector.broadcast %c0_i32_11 : i32 to vector<32x256xi32>
    %39 = arith.cmpi ne, %37, %38 : vector<32x256xi32>
    %40 = arith.xori %24, %39 : vector<32x256xi1>
    %41 = arith.xori %40, %35 : vector<32x256xi1>
    %42 = arith.select %41, %27, %20 : vector<32x256xi1>, vector<32x256xf32>
    %43 = arith.select %41, %30, %2 : vector<32x256xi1>, vector<32x256xi32>
    %c2_i32_12 = arith.constant 2 : i32
    %44 = vector.broadcast %c2_i32_12 : i32 to vector<32x256xi32>
    %45 = arith.andi %2, %44 : vector<32x256xi32>
    %c0_i32_13 = arith.constant 0 : i32
    %46 = vector.broadcast %c0_i32_13 : i32 to vector<32x256xi32>
    %47 = arith.cmpi eq, %45, %46 : vector<32x256xi32>
    %c30_i32 = arith.constant 30 : i32
    %48 = tpu.dynamic_rotate %42 by %c30_i32 dim 0 : vector<32x256xf32>, i32 -> vector<32x256xf32>
    %c2_i32_14 = arith.constant 2 : i32
    %49 = tpu.dynamic_rotate %42 by %c2_i32_14 dim 0 : vector<32x256xf32>, i32 -> vector<32x256xf32>
    %50 = arith.select %47, %48, %49 : vector<32x256xi1>, vector<32x256xf32>
    %c30_i32_15 = arith.constant 30 : i32
    %51 = tpu.dynamic_rotate %43 by %c30_i32_15 dim 0 : vector<32x256xi32>, i32 -> vector<32x256xi32>
    %c2_i32_16 = arith.constant 2 : i32
    %52 = tpu.dynamic_rotate %43 by %c2_i32_16 dim 0 : vector<32x256xi32>, i32 -> vector<32x256xi32>
    %53 = arith.select %47, %51, %52 : vector<32x256xi1>, vector<32x256xi32>
    %54 = arith.cmpf olt, %42, %50 : vector<32x256xf32>
    %55 = arith.cmpf oeq, %42, %50 : vector<32x256xf32>
    %56 = arith.cmpi slt, %43, %53 : vector<32x256xi32>
    %57 = arith.andi %55, %56 : vector<32x256xi1>
    %58 = arith.ori %54, %57 : vector<32x256xi1>
    %c4_i32 = arith.constant 4 : i32
    %59 = vector.broadcast %c4_i32 : i32 to vector<32x256xi32>
    %60 = arith.andi %2, %59 : vector<32x256xi32>
    %c0_i32_17 = arith.constant 0 : i32
    %61 = vector.broadcast %c0_i32_17 : i32 to vector<32x256xi32>
    %62 = arith.cmpi ne, %60, %61 : vector<32x256xi32>
    %63 = arith.xori %47, %62 : vector<32x256xi1>
    %64 = arith.xori %63, %58 : vector<32x256xi1>
    %65 = arith.select %64, %50, %42 : vector<32x256xi1>, vector<32x256xf32>
    %66 = arith.select %64, %53, %43 : vector<32x256xi1>, vector<32x256xi32>
    %c1_i32_18 = arith.constant 1 : i32
    %67 = vector.broadcast %c1_i32_18 : i32 to vector<32x256xi32>
    %68 = arith.andi %2, %67 : vector<32x256xi32>
    %c0_i32_19 = arith.constant 0 : i32
    %69 = vector.broadcast %c0_i32_19 : i32 to vector<32x256xi32>
    %70 = arith.cmpi eq, %68, %69 : vector<32x256xi32>
    %c31_i32_20 = arith.constant 31 : i32
    %71 = tpu.dynamic_rotate %65 by %c31_i32_20 dim 0 : vector<32x256xf32>, i32 -> vector<32x256xf32>
    %c1_i32_21 = arith.constant 1 : i32
    %72 = tpu.dynamic_rotate %65 by %c1_i32_21 dim 0 : vector<32x256xf32>, i32 -> vector<32x256xf32>
    %73 = arith.select %70, %71, %72 : vector<32x256xi1>, vector<32x256xf32>
    %c31_i32_22 = arith.constant 31 : i32
    %74 = tpu.dynamic_rotate %66 by %c31_i32_22 dim 0 : vector<32x256xi32>, i32 -> vector<32x256xi32>
    %c1_i32_23 = arith.constant 1 : i32
    %75 = tpu.dynamic_rotate %66 by %c1_i32_23 dim 0 : vector<32x256xi32>, i32 -> vector<32x256xi32>
    %76 = arith.select %70, %74, %75 : vector<32x256xi1>, vector<32x256xi32>
    %77 = arith.cmpf olt, %65, %73 : vector<32x256xf32>
    %78 = arith.cmpf oeq, %65, %73 : vector<32x256xf32>
    %79 = arith.cmpi slt, %66, %76 : vector<32x256xi32>
    %80 = arith.andi %78, %79 : vector<32x256xi1>
    %81 = arith.ori %77, %80 : vector<32x256xi1>
    %c4_i32_24 = arith.constant 4 : i32
    %82 = vector.broadcast %c4_i32_24 : i32 to vector<32x256xi32>
    %83 = arith.andi %2, %82 : vector<32x256xi32>
    %c0_i32_25 = arith.constant 0 : i32
    %84 = vector.broadcast %c0_i32_25 : i32 to vector<32x256xi32>
    %85 = arith.cmpi ne, %83, %84 : vector<32x256xi32>
    %86 = arith.xori %70, %85 : vector<32x256xi1>
    %87 = arith.xori %86, %81 : vector<32x256xi1>
    %88 = arith.select %87, %73, %65 : vector<32x256xi1>, vector<32x256xf32>
    %89 = arith.select %87, %76, %66 : vector<32x256xi1>, vector<32x256xi32>
    %c4_i32_26 = arith.constant 4 : i32
    %90 = vector.broadcast %c4_i32_26 : i32 to vector<32x256xi32>
    %91 = arith.andi %2, %90 : vector<32x256xi32>
    %c0_i32_27 = arith.constant 0 : i32
    %92 = vector.broadcast %c0_i32_27 : i32 to vector<32x256xi32>
    %93 = arith.cmpi eq, %91, %92 : vector<32x256xi32>
    %c28_i32 = arith.constant 28 : i32
    %94 = tpu.dynamic_rotate %88 by %c28_i32 dim 0 : vector<32x256xf32>, i32 -> vector<32x256xf32>
    %c4_i32_28 = arith.constant 4 : i32
    %95 = tpu.dynamic_rotate %88 by %c4_i32_28 dim 0 : vector<32x256xf32>, i32 -> vector<32x256xf32>
    %96 = arith.select %93, %94, %95 : vector<32x256xi1>, vector<32x256xf32>
    %c28_i32_29 = arith.constant 28 : i32
    %97 = tpu.dynamic_rotate %89 by %c28_i32_29 dim 0 : vector<32x256xi32>, i32 -> vector<32x256xi32>
    %c4_i32_30 = arith.constant 4 : i32
    %98 = tpu.dynamic_rotate %89 by %c4_i32_30 dim 0 : vector<32x256xi32>, i32 -> vector<32x256xi32>
    %99 = arith.select %93, %97, %98 : vector<32x256xi1>, vector<32x256xi32>
    %100 = arith.cmpf olt, %88, %96 : vector<32x256xf32>
    %101 = arith.cmpf oeq, %88, %96 : vector<32x256xf32>
    %102 = arith.cmpi slt, %89, %99 : vector<32x256xi32>
    %103 = arith.andi %101, %102 : vector<32x256xi1>
    %104 = arith.ori %100, %103 : vector<32x256xi1>
    %c8_i32 = arith.constant 8 : i32
    %105 = vector.broadcast %c8_i32 : i32 to vector<32x256xi32>
    %106 = arith.andi %2, %105 : vector<32x256xi32>
    %c0_i32_31 = arith.constant 0 : i32
    %107 = vector.broadcast %c0_i32_31 : i32 to vector<32x256xi32>
    %108 = arith.cmpi ne, %106, %107 : vector<32x256xi32>
    %109 = arith.xori %93, %108 : vector<32x256xi1>
    %110 = arith.xori %109, %104 : vector<32x256xi1>
    %111 = arith.select %110, %96, %88 : vector<32x256xi1>, vector<32x256xf32>
    %112 = arith.select %110, %99, %89 : vector<32x256xi1>, vector<32x256xi32>
    %c2_i32_32 = arith.constant 2 : i32
    %113 = vector.broadcast %c2_i32_32 : i32 to vector<32x256xi32>
    %114 = arith.andi %2, %113 : vector<32x256xi32>
    %c0_i32_33 = arith.constant 0 : i32
    %115 = vector.broadcast %c0_i32_33 : i32 to vector<32x256xi32>
    %116 = arith.cmpi eq, %114, %115 : vector<32x256xi32>
    %c30_i32_34 = arith.constant 30 : i32
    %117 = tpu.dynamic_rotate %111 by %c30_i32_34 dim 0 : vector<32x256xf32>, i32 -> vector<32x256xf32>
    %c2_i32_35 = arith.constant 2 : i32
    %118 = tpu.dynamic_rotate %111 by %c2_i32_35 dim 0 : vector<32x256xf32>, i32 -> vector<32x256xf32>
    %119 = arith.select %116, %117, %118 : vector<32x256xi1>, vector<32x256xf32>
    %c30_i32_36 = arith.constant 30 : i32
    %120 = tpu.dynamic_rotate %112 by %c30_i32_36 dim 0 : vector<32x256xi32>, i32 -> vector<32x256xi32>
    %c2_i32_37 = arith.constant 2 : i32
    %121 = tpu.dynamic_rotate %112 by %c2_i32_37 dim 0 : vector<32x256xi32>, i32 -> vector<32x256xi32>
    %122 = arith.select %116, %120, %121 : vector<32x256xi1>, vector<32x256xi32>
    %123 = arith.cmpf olt, %111, %119 : vector<32x256xf32>
    %124 = arith.cmpf oeq, %111, %119 : vector<32x256xf32>
    %125 = arith.cmpi slt, %112, %122 : vector<32x256xi32>
    %126 = arith.andi %124, %125 : vector<32x256xi1>
    %127 = arith.ori %123, %126 : vector<32x256xi1>
    %c8_i32_38 = arith.constant 8 : i32
    %128 = vector.broadcast %c8_i32_38 : i32 to vector<32x256xi32>
    %129 = arith.andi %2, %128 : vector<32x256xi32>
    %c0_i32_39 = arith.constant 0 : i32
    %130 = vector.broadcast %c0_i32_39 : i32 to vector<32x256xi32>
    %131 = arith.cmpi ne, %129, %130 : vector<32x256xi32>
    %132 = arith.xori %116, %131 : vector<32x256xi1>
    %133 = arith.xori %132, %127 : vector<32x256xi1>
    %134 = arith.select %133, %119, %111 : vector<32x256xi1>, vector<32x256xf32>
    %135 = arith.select %133, %122, %112 : vector<32x256xi1>, vector<32x256xi32>
    %c1_i32_40 = arith.constant 1 : i32
    %136 = vector.broadcast %c1_i32_40 : i32 to vector<32x256xi32>
    %137 = arith.andi %2, %136 : vector<32x256xi32>
    %c0_i32_41 = arith.constant 0 : i32
    %138 = vector.broadcast %c0_i32_41 : i32 to vector<32x256xi32>
    %139 = arith.cmpi eq, %137, %138 : vector<32x256xi32>
    %c31_i32_42 = arith.constant 31 : i32
    %140 = tpu.dynamic_rotate %134 by %c31_i32_42 dim 0 : vector<32x256xf32>, i32 -> vector<32x256xf32>
    %c1_i32_43 = arith.constant 1 : i32
    %141 = tpu.dynamic_rotate %134 by %c1_i32_43 dim 0 : vector<32x256xf32>, i32 -> vector<32x256xf32>
    %142 = arith.select %139, %140, %141 : vector<32x256xi1>, vector<32x256xf32>
    %c31_i32_44 = arith.constant 31 : i32
    %143 = tpu.dynamic_rotate %135 by %c31_i32_44 dim 0 : vector<32x256xi32>, i32 -> vector<32x256xi32>
    %c1_i32_45 = arith.constant 1 : i32
    %144 = tpu.dynamic_rotate %135 by %c1_i32_45 dim 0 : vector<32x256xi32>, i32 -> vector<32x256xi32>
    %145 = arith.select %139, %143, %144 : vector<32x256xi1>, vector<32x256xi32>
    %146 = arith.cmpf olt, %134, %142 : vector<32x256xf32>
    %147 = arith.cmpf oeq, %134, %142 : vector<32x256xf32>
    %148 = arith.cmpi slt, %135, %145 : vector<32x256xi32>
    %149 = arith.andi %147, %148 : vector<32x256xi1>
    %150 = arith.ori %146, %149 : vector<32x256xi1>
    %c8_i32_46 = arith.constant 8 : i32
    %151 = vector.broadcast %c8_i32_46 : i32 to vector<32x256xi32>
    %152 = arith.andi %2, %151 : vector<32x256xi32>
    %c0_i32_47 = arith.constant 0 : i32
    %153 = vector.broadcast %c0_i32_47 : i32 to vector<32x256xi32>
    %154 = arith.cmpi ne, %152, %153 : vector<32x256xi32>
    %155 = arith.xori %139, %154 : vector<32x256xi1>
    %156 = arith.xori %155, %150 : vector<32x256xi1>
    %157 = arith.select %156, %142, %134 : vector<32x256xi1>, vector<32x256xf32>
    %158 = arith.select %156, %145, %135 : vector<32x256xi1>, vector<32x256xi32>
    %c8_i32_48 = arith.constant 8 : i32
    %159 = vector.broadcast %c8_i32_48 : i32 to vector<32x256xi32>
    %160 = arith.andi %2, %159 : vector<32x256xi32>
    %c0_i32_49 = arith.constant 0 : i32
    %161 = vector.broadcast %c0_i32_49 : i32 to vector<32x256xi32>
    %162 = arith.cmpi eq, %160, %161 : vector<32x256xi32>
    %c24_i32_50 = arith.constant 24 : i32
    %163 = tpu.dynamic_rotate %157 by %c24_i32_50 dim 0 : vector<32x256xf32>, i32 -> vector<32x256xf32>
    %c8_i32_51 = arith.constant 8 : i32
    %164 = tpu.dynamic_rotate %157 by %c8_i32_51 dim 0 : vector<32x256xf32>, i32 -> vector<32x256xf32>
    %165 = arith.select %162, %163, %164 : vector<32x256xi1>, vector<32x256xf32>
    %c24_i32_52 = arith.constant 24 : i32
    %166 = tpu.dynamic_rotate %158 by %c24_i32_52 dim 0 : vector<32x256xi32>, i32 -> vector<32x256xi32>
    %c8_i32_53 = arith.constant 8 : i32
    %167 = tpu.dynamic_rotate %158 by %c8_i32_53 dim 0 : vector<32x256xi32>, i32 -> vector<32x256xi32>
    %168 = arith.select %162, %166, %167 : vector<32x256xi1>, vector<32x256xi32>
    %169 = arith.cmpf olt, %157, %165 : vector<32x256xf32>
    %170 = arith.cmpf oeq, %157, %165 : vector<32x256xf32>
    %171 = arith.cmpi slt, %158, %168 : vector<32x256xi32>
    %172 = arith.andi %170, %171 : vector<32x256xi1>
    %173 = arith.ori %169, %172 : vector<32x256xi1>
    %c16_i32 = arith.constant 16 : i32
    %174 = vector.broadcast %c16_i32 : i32 to vector<32x256xi32>
    %175 = arith.andi %2, %174 : vector<32x256xi32>
    %c0_i32_54 = arith.constant 0 : i32
    %176 = vector.broadcast %c0_i32_54 : i32 to vector<32x256xi32>
    %177 = arith.cmpi ne, %175, %176 : vector<32x256xi32>
    %178 = arith.xori %162, %177 : vector<32x256xi1>
    %179 = arith.xori %178, %173 : vector<32x256xi1>
    %180 = arith.select %179, %165, %157 : vector<32x256xi1>, vector<32x256xf32>
    %181 = arith.select %179, %168, %158 : vector<32x256xi1>, vector<32x256xi32>
    %c4_i32_55 = arith.constant 4 : i32
    %182 = vector.broadcast %c4_i32_55 : i32 to vector<32x256xi32>
    %183 = arith.andi %2, %182 : vector<32x256xi32>
    %c0_i32_56 = arith.constant 0 : i32
    %184 = vector.broadcast %c0_i32_56 : i32 to vector<32x256xi32>
    %185 = arith.cmpi eq, %183, %184 : vector<32x256xi32>
    %c28_i32_57 = arith.constant 28 : i32
    %186 = tpu.dynamic_rotate %180 by %c28_i32_57 dim 0 : vector<32x256xf32>, i32 -> vector<32x256xf32>
    %c4_i32_58 = arith.constant 4 : i32
    %187 = tpu.dynamic_rotate %180 by %c4_i32_58 dim 0 : vector<32x256xf32>, i32 -> vector<32x256xf32>
    %188 = arith.select %185, %186, %187 : vector<32x256xi1>, vector<32x256xf32>
    %c28_i32_59 = arith.constant 28 : i32
    %189 = tpu.dynamic_rotate %181 by %c28_i32_59 dim 0 : vector<32x256xi32>, i32 -> vector<32x256xi32>
    %c4_i32_60 = arith.constant 4 : i32
    %190 = tpu.dynamic_rotate %181 by %c4_i32_60 dim 0 : vector<32x256xi32>, i32 -> vector<32x256xi32>
    %191 = arith.select %185, %189, %190 : vector<32x256xi1>, vector<32x256xi32>
    %192 = arith.cmpf olt, %180, %188 : vector<32x256xf32>
    %193 = arith.cmpf oeq, %180, %188 : vector<32x256xf32>
    %194 = arith.cmpi slt, %181, %191 : vector<32x256xi32>
    %195 = arith.andi %193, %194 : vector<32x256xi1>
    %196 = arith.ori %192, %195 : vector<32x256xi1>
    %c16_i32_61 = arith.constant 16 : i32
    %197 = vector.broadcast %c16_i32_61 : i32 to vector<32x256xi32>
    %198 = arith.andi %2, %197 : vector<32x256xi32>
    %c0_i32_62 = arith.constant 0 : i32
    %199 = vector.broadcast %c0_i32_62 : i32 to vector<32x256xi32>
    %200 = arith.cmpi ne, %198, %199 : vector<32x256xi32>
    %201 = arith.xori %185, %200 : vector<32x256xi1>
    %202 = arith.xori %201, %196 : vector<32x256xi1>
    %203 = arith.select %202, %188, %180 : vector<32x256xi1>, vector<32x256xf32>
    %204 = arith.select %202, %191, %181 : vector<32x256xi1>, vector<32x256xi32>
    %c2_i32_63 = arith.constant 2 : i32
    %205 = vector.broadcast %c2_i32_63 : i32 to vector<32x256xi32>
    %206 = arith.andi %2, %205 : vector<32x256xi32>
    %c0_i32_64 = arith.constant 0 : i32
    %207 = vector.broadcast %c0_i32_64 : i32 to vector<32x256xi32>
    %208 = arith.cmpi eq, %206, %207 : vector<32x256xi32>
    %c30_i32_65 = arith.constant 30 : i32
    %209 = tpu.dynamic_rotate %203 by %c30_i32_65 dim 0 : vector<32x256xf32>, i32 -> vector<32x256xf32>
    %c2_i32_66 = arith.constant 2 : i32
    %210 = tpu.dynamic_rotate %203 by %c2_i32_66 dim 0 : vector<32x256xf32>, i32 -> vector<32x256xf32>
    %211 = arith.select %208, %209, %210 : vector<32x256xi1>, vector<32x256xf32>
    %c30_i32_67 = arith.constant 30 : i32
    %212 = tpu.dynamic_rotate %204 by %c30_i32_67 dim 0 : vector<32x256xi32>, i32 -> vector<32x256xi32>
    %c2_i32_68 = arith.constant 2 : i32
    %213 = tpu.dynamic_rotate %204 by %c2_i32_68 dim 0 : vector<32x256xi32>, i32 -> vector<32x256xi32>
    %214 = arith.select %208, %212, %213 : vector<32x256xi1>, vector<32x256xi32>
    %215 = arith.cmpf olt, %203, %211 : vector<32x256xf32>
    %216 = arith.cmpf oeq, %203, %211 : vector<32x256xf32>
    %217 = arith.cmpi slt, %204, %214 : vector<32x256xi32>
    %218 = arith.andi %216, %217 : vector<32x256xi1>
    %219 = arith.ori %215, %218 : vector<32x256xi1>
    %c16_i32_69 = arith.constant 16 : i32
    %220 = vector.broadcast %c16_i32_69 : i32 to vector<32x256xi32>
    %221 = arith.andi %2, %220 : vector<32x256xi32>
    %c0_i32_70 = arith.constant 0 : i32
    %222 = vector.broadcast %c0_i32_70 : i32 to vector<32x256xi32>
    %223 = arith.cmpi ne, %221, %222 : vector<32x256xi32>
    %224 = arith.xori %208, %223 : vector<32x256xi1>
    %225 = arith.xori %224, %219 : vector<32x256xi1>
    %226 = arith.select %225, %211, %203 : vector<32x256xi1>, vector<32x256xf32>
    %227 = arith.select %225, %214, %204 : vector<32x256xi1>, vector<32x256xi32>
    %c1_i32_71 = arith.constant 1 : i32
    %228 = vector.broadcast %c1_i32_71 : i32 to vector<32x256xi32>
    %229 = arith.andi %2, %228 : vector<32x256xi32>
    %c0_i32_72 = arith.constant 0 : i32
    %230 = vector.broadcast %c0_i32_72 : i32 to vector<32x256xi32>
    %231 = arith.cmpi eq, %229, %230 : vector<32x256xi32>
    %c31_i32_73 = arith.constant 31 : i32
    %232 = tpu.dynamic_rotate %226 by %c31_i32_73 dim 0 : vector<32x256xf32>, i32 -> vector<32x256xf32>
    %c1_i32_74 = arith.constant 1 : i32
    %233 = tpu.dynamic_rotate %226 by %c1_i32_74 dim 0 : vector<32x256xf32>, i32 -> vector<32x256xf32>
    %234 = arith.select %231, %232, %233 : vector<32x256xi1>, vector<32x256xf32>
    %c31_i32_75 = arith.constant 31 : i32
    %235 = tpu.dynamic_rotate %227 by %c31_i32_75 dim 0 : vector<32x256xi32>, i32 -> vector<32x256xi32>
    %c1_i32_76 = arith.constant 1 : i32
    %236 = tpu.dynamic_rotate %227 by %c1_i32_76 dim 0 : vector<32x256xi32>, i32 -> vector<32x256xi32>
    %237 = arith.select %231, %235, %236 : vector<32x256xi1>, vector<32x256xi32>
    %238 = arith.cmpf olt, %226, %234 : vector<32x256xf32>
    %239 = arith.cmpf oeq, %226, %234 : vector<32x256xf32>
    %240 = arith.cmpi slt, %227, %237 : vector<32x256xi32>
    %241 = arith.andi %239, %240 : vector<32x256xi1>
    %242 = arith.ori %238, %241 : vector<32x256xi1>
    %c16_i32_77 = arith.constant 16 : i32
    %243 = vector.broadcast %c16_i32_77 : i32 to vector<32x256xi32>
    %244 = arith.andi %2, %243 : vector<32x256xi32>
    %c0_i32_78 = arith.constant 0 : i32
    %245 = vector.broadcast %c0_i32_78 : i32 to vector<32x256xi32>
    %246 = arith.cmpi ne, %244, %245 : vector<32x256xi32>
    %247 = arith.xori %231, %246 : vector<32x256xi1>
    %248 = arith.xori %247, %242 : vector<32x256xi1>
    %249 = arith.select %248, %234, %226 : vector<32x256xi1>, vector<32x256xf32>
    %250 = arith.select %248, %237, %227 : vector<32x256xi1>, vector<32x256xi32>
    %c16_i32_79 = arith.constant 16 : i32
    %251 = vector.broadcast %c16_i32_79 : i32 to vector<32x256xi32>
    %252 = arith.andi %2, %251 : vector<32x256xi32>
    %c0_i32_80 = arith.constant 0 : i32
    %253 = vector.broadcast %c0_i32_80 : i32 to vector<32x256xi32>
    %254 = arith.cmpi eq, %252, %253 : vector<32x256xi32>
    %c16_i32_81 = arith.constant 16 : i32
    %255 = tpu.dynamic_rotate %249 by %c16_i32_81 dim 0 : vector<32x256xf32>, i32 -> vector<32x256xf32>
    %c16_i32_82 = arith.constant 16 : i32
    %256 = tpu.dynamic_rotate %249 by %c16_i32_82 dim 0 : vector<32x256xf32>, i32 -> vector<32x256xf32>
    %257 = arith.select %254, %255, %256 : vector<32x256xi1>, vector<32x256xf32>
    %c16_i32_83 = arith.constant 16 : i32
    %258 = tpu.dynamic_rotate %250 by %c16_i32_83 dim 0 : vector<32x256xi32>, i32 -> vector<32x256xi32>
    %c16_i32_84 = arith.constant 16 : i32
    %259 = tpu.dynamic_rotate %250 by %c16_i32_84 dim 0 : vector<32x256xi32>, i32 -> vector<32x256xi32>
    %260 = arith.select %254, %258, %259 : vector<32x256xi1>, vector<32x256xi32>
    %261 = arith.cmpf olt, %249, %257 : vector<32x256xf32>
    %262 = arith.cmpf oeq, %249, %257 : vector<32x256xf32>
    %263 = arith.cmpi slt, %250, %260 : vector<32x256xi32>
    %264 = arith.andi %262, %263 : vector<32x256xi1>
    %265 = arith.ori %261, %264 : vector<32x256xi1>
    %c32_i32 = arith.constant 32 : i32
    %266 = vector.broadcast %c32_i32 : i32 to vector<32x256xi32>
    %267 = arith.andi %2, %266 : vector<32x256xi32>
    %c0_i32_85 = arith.constant 0 : i32
    %268 = vector.broadcast %c0_i32_85 : i32 to vector<32x256xi32>
    %269 = arith.cmpi ne, %267, %268 : vector<32x256xi32>
    %270 = arith.xori %254, %269 : vector<32x256xi1>
    %271 = arith.xori %270, %265 : vector<32x256xi1>
    %272 = arith.select %271, %257, %249 : vector<32x256xi1>, vector<32x256xf32>
    %273 = arith.select %271, %260, %250 : vector<32x256xi1>, vector<32x256xi32>
    %c8_i32_86 = arith.constant 8 : i32
    %274 = vector.broadcast %c8_i32_86 : i32 to vector<32x256xi32>
    %275 = arith.andi %2, %274 : vector<32x256xi32>
    %c0_i32_87 = arith.constant 0 : i32
    %276 = vector.broadcast %c0_i32_87 : i32 to vector<32x256xi32>
    %277 = arith.cmpi eq, %275, %276 : vector<32x256xi32>
    %c24_i32_88 = arith.constant 24 : i32
    %278 = tpu.dynamic_rotate %272 by %c24_i32_88 dim 0 : vector<32x256xf32>, i32 -> vector<32x256xf32>
    %c8_i32_89 = arith.constant 8 : i32
    %279 = tpu.dynamic_rotate %272 by %c8_i32_89 dim 0 : vector<32x256xf32>, i32 -> vector<32x256xf32>
    %280 = arith.select %277, %278, %279 : vector<32x256xi1>, vector<32x256xf32>
    %c24_i32_90 = arith.constant 24 : i32
    %281 = tpu.dynamic_rotate %273 by %c24_i32_90 dim 0 : vector<32x256xi32>, i32 -> vector<32x256xi32>
    %c8_i32_91 = arith.constant 8 : i32
    %282 = tpu.dynamic_rotate %273 by %c8_i32_91 dim 0 : vector<32x256xi32>, i32 -> vector<32x256xi32>
    %283 = arith.select %277, %281, %282 : vector<32x256xi1>, vector<32x256xi32>
    %284 = arith.cmpf olt, %272, %280 : vector<32x256xf32>
    %285 = arith.cmpf oeq, %272, %280 : vector<32x256xf32>
    %286 = arith.cmpi slt, %273, %283 : vector<32x256xi32>
    %287 = arith.andi %285, %286 : vector<32x256xi1>
    %288 = arith.ori %284, %287 : vector<32x256xi1>
    %c32_i32_92 = arith.constant 32 : i32
    %289 = vector.broadcast %c32_i32_92 : i32 to vector<32x256xi32>
    %290 = arith.andi %2, %289 : vector<32x256xi32>
    %c0_i32_93 = arith.constant 0 : i32
    %291 = vector.broadcast %c0_i32_93 : i32 to vector<32x256xi32>
    %292 = arith.cmpi ne, %290, %291 : vector<32x256xi32>
    %293 = arith.xori %277, %292 : vector<32x256xi1>
    %294 = arith.xori %293, %288 : vector<32x256xi1>
    %295 = arith.select %294, %280, %272 : vector<32x256xi1>, vector<32x256xf32>
    %296 = arith.select %294, %283, %273 : vector<32x256xi1>, vector<32x256xi32>
    %c4_i32_94 = arith.constant 4 : i32
    %297 = vector.broadcast %c4_i32_94 : i32 to vector<32x256xi32>
    %298 = arith.andi %2, %297 : vector<32x256xi32>
    %c0_i32_95 = arith.constant 0 : i32
    %299 = vector.broadcast %c0_i32_95 : i32 to vector<32x256xi32>
    %300 = arith.cmpi eq, %298, %299 : vector<32x256xi32>
    %c28_i32_96 = arith.constant 28 : i32
    %301 = tpu.dynamic_rotate %295 by %c28_i32_96 dim 0 : vector<32x256xf32>, i32 -> vector<32x256xf32>
    %c4_i32_97 = arith.constant 4 : i32
    %302 = tpu.dynamic_rotate %295 by %c4_i32_97 dim 0 : vector<32x256xf32>, i32 -> vector<32x256xf32>
    %303 = arith.select %300, %301, %302 : vector<32x256xi1>, vector<32x256xf32>
    %c28_i32_98 = arith.constant 28 : i32
    %304 = tpu.dynamic_rotate %296 by %c28_i32_98 dim 0 : vector<32x256xi32>, i32 -> vector<32x256xi32>
    %c4_i32_99 = arith.constant 4 : i32
    %305 = tpu.dynamic_rotate %296 by %c4_i32_99 dim 0 : vector<32x256xi32>, i32 -> vector<32x256xi32>
    %306 = arith.select %300, %304, %305 : vector<32x256xi1>, vector<32x256xi32>
    %307 = arith.cmpf olt, %295, %303 : vector<32x256xf32>
    %308 = arith.cmpf oeq, %295, %303 : vector<32x256xf32>
    %309 = arith.cmpi slt, %296, %306 : vector<32x256xi32>
    %310 = arith.andi %308, %309 : vector<32x256xi1>
    %311 = arith.ori %307, %310 : vector<32x256xi1>
    %c32_i32_100 = arith.constant 32 : i32
    %312 = vector.broadcast %c32_i32_100 : i32 to vector<32x256xi32>
    %313 = arith.andi %2, %312 : vector<32x256xi32>
    %c0_i32_101 = arith.constant 0 : i32
    %314 = vector.broadcast %c0_i32_101 : i32 to vector<32x256xi32>
    %315 = arith.cmpi ne, %313, %314 : vector<32x256xi32>
    %316 = arith.xori %300, %315 : vector<32x256xi1>
    %317 = arith.xori %316, %311 : vector<32x256xi1>
    %318 = arith.select %317, %303, %295 : vector<32x256xi1>, vector<32x256xf32>
    %319 = arith.select %317, %306, %296 : vector<32x256xi1>, vector<32x256xi32>
    %c2_i32_102 = arith.constant 2 : i32
    %320 = vector.broadcast %c2_i32_102 : i32 to vector<32x256xi32>
    %321 = arith.andi %2, %320 : vector<32x256xi32>
    %c0_i32_103 = arith.constant 0 : i32
    %322 = vector.broadcast %c0_i32_103 : i32 to vector<32x256xi32>
    %323 = arith.cmpi eq, %321, %322 : vector<32x256xi32>
    %c30_i32_104 = arith.constant 30 : i32
    %324 = tpu.dynamic_rotate %318 by %c30_i32_104 dim 0 : vector<32x256xf32>, i32 -> vector<32x256xf32>
    %c2_i32_105 = arith.constant 2 : i32
    %325 = tpu.dynamic_rotate %318 by %c2_i32_105 dim 0 : vector<32x256xf32>, i32 -> vector<32x256xf32>
    %326 = arith.select %323, %324, %325 : vector<32x256xi1>, vector<32x256xf32>
    %c30_i32_106 = arith.constant 30 : i32
    %327 = tpu.dynamic_rotate %319 by %c30_i32_106 dim 0 : vector<32x256xi32>, i32 -> vector<32x256xi32>
    %c2_i32_107 = arith.constant 2 : i32
    %328 = tpu.dynamic_rotate %319 by %c2_i32_107 dim 0 : vector<32x256xi32>, i32 -> vector<32x256xi32>
    %329 = arith.select %323, %327, %328 : vector<32x256xi1>, vector<32x256xi32>
    %330 = arith.cmpf olt, %318, %326 : vector<32x256xf32>
    %331 = arith.cmpf oeq, %318, %326 : vector<32x256xf32>
    %332 = arith.cmpi slt, %319, %329 : vector<32x256xi32>
    %333 = arith.andi %331, %332 : vector<32x256xi1>
    %334 = arith.ori %330, %333 : vector<32x256xi1>
    %c32_i32_108 = arith.constant 32 : i32
    %335 = vector.broadcast %c32_i32_108 : i32 to vector<32x256xi32>
    %336 = arith.andi %2, %335 : vector<32x256xi32>
    %c0_i32_109 = arith.constant 0 : i32
    %337 = vector.broadcast %c0_i32_109 : i32 to vector<32x256xi32>
    %338 = arith.cmpi ne, %336, %337 : vector<32x256xi32>
    %339 = arith.xori %323, %338 : vector<32x256xi1>
    %340 = arith.xori %339, %334 : vector<32x256xi1>
    %341 = arith.select %340, %326, %318 : vector<32x256xi1>, vector<32x256xf32>
    %342 = arith.select %340, %329, %319 : vector<32x256xi1>, vector<32x256xi32>
    %c1_i32_110 = arith.constant 1 : i32
    %343 = vector.broadcast %c1_i32_110 : i32 to vector<32x256xi32>
    %344 = arith.andi %2, %343 : vector<32x256xi32>
    %c0_i32_111 = arith.constant 0 : i32
    %345 = vector.broadcast %c0_i32_111 : i32 to vector<32x256xi32>
    %346 = arith.cmpi eq, %344, %345 : vector<32x256xi32>
    %c31_i32_112 = arith.constant 31 : i32
    %347 = tpu.dynamic_rotate %341 by %c31_i32_112 dim 0 : vector<32x256xf32>, i32 -> vector<32x256xf32>
    %c1_i32_113 = arith.constant 1 : i32
    %348 = tpu.dynamic_rotate %341 by %c1_i32_113 dim 0 : vector<32x256xf32>, i32 -> vector<32x256xf32>
    %349 = arith.select %346, %347, %348 : vector<32x256xi1>, vector<32x256xf32>
    %c31_i32_114 = arith.constant 31 : i32
    %350 = tpu.dynamic_rotate %342 by %c31_i32_114 dim 0 : vector<32x256xi32>, i32 -> vector<32x256xi32>
    %c1_i32_115 = arith.constant 1 : i32
    %351 = tpu.dynamic_rotate %342 by %c1_i32_115 dim 0 : vector<32x256xi32>, i32 -> vector<32x256xi32>
    %352 = arith.select %346, %350, %351 : vector<32x256xi1>, vector<32x256xi32>
    %353 = arith.cmpf olt, %341, %349 : vector<32x256xf32>
    %354 = arith.cmpf oeq, %341, %349 : vector<32x256xf32>
    %355 = arith.cmpi slt, %342, %352 : vector<32x256xi32>
    %356 = arith.andi %354, %355 : vector<32x256xi1>
    %357 = arith.ori %353, %356 : vector<32x256xi1>
    %c32_i32_116 = arith.constant 32 : i32
    %358 = vector.broadcast %c32_i32_116 : i32 to vector<32x256xi32>
    %359 = arith.andi %2, %358 : vector<32x256xi32>
    %c0_i32_117 = arith.constant 0 : i32
    %360 = vector.broadcast %c0_i32_117 : i32 to vector<32x256xi32>
    %361 = arith.cmpi ne, %359, %360 : vector<32x256xi32>
    %362 = arith.xori %346, %361 : vector<32x256xi1>
    %363 = arith.xori %362, %357 : vector<32x256xi1>
    %364 = arith.select %363, %349, %341 : vector<32x256xi1>, vector<32x256xf32>
    %365 = arith.select %363, %352, %342 : vector<32x256xi1>, vector<32x256xi32>
    %366 = arith.subf %364, %17 : vector<32x256xf32>
    %c0_118 = arith.constant 0 : index
    %c0_119 = arith.constant 0 : index
    %367 = vector.load %arg3[%c0_118, %c0_119] : memref<32x256xf32, #tpu.memory_space<vmem>>, vector<32x256xf32>
    tpu.vector_store %arg3[%c0_118, %c0_119], %366 {strides = array<i32>} : memref<32x256xf32, #tpu.memory_space<vmem>>, vector<32x256xf32>,
    %c0_120 = arith.constant 0 : index
    %c0_121 = arith.constant 0 : index
    %368 = vector.load %arg4[%c0_120, %c0_121] : memref<32x256xi32, #tpu.memory_space<vmem>>, vector<32x256xi32>
    tpu.vector_store %arg4[%c0_120, %c0_121], %365 {strides = array<i32>} : memref<32x256xi32, #tpu.memory_space<vmem>>, vector<32x256xi32>,
    return
  }
  func.func @transform_0(%arg0: i32) -> (i32, i32) {
    %c0_i32 = arith.constant 0 : i32
    %c0_i32_0 = arith.constant 0 : i32
    return %c0_i32, %arg0 : i32, i32
  }
  func.func @transform_1(%arg0: i32) -> (i32, i32) {
    %c0_i32 = arith.constant 0 : i32
    %c0_i32_0 = arith.constant 0 : i32
    %c0_i32_1 = arith.constant 0 : i32
    return %c0_i32, %c0_i32_0 : i32, i32
  }
  func.func @transform_2(%arg0: i32) -> (i32, i32) {
    %c0_i32 = arith.constant 0 : i32
    %c0_i32_0 = arith.constant 0 : i32
    return %c0_i32, %arg0 : i32, i32
  }
  func.func @transform_3(%arg0: i32) -> (i32, i32) {
    %c0_i32 = arith.constant 0 : i32
    %c0_i32_0 = arith.constant 0 : i32
    return %c0_i32, %arg0 : i32, i32
  }
}

</mosaic_0001>

<llo_original>
// kernel: tpu_custom_call.1
$region0: #{tpu_custom_call.1}
  #allocation0 [shape = 'u32[]', space=smem, size = 0x4, offset = 0x4, fixed_abs, tag = 'smem constant byte address 0x4 - core index']
  #allocation1 [shape = 'u32[144,128]{1,0:T(1,128)}', space=vmem, size = 0x12000, scoped, tag = 'internal scratch']
  %s0 = inlined_call_operand.hbm [shape: f32[32,256], index: 0, kind: input, shape index: {}]
  %s1 = inlined_call_operand.hbm [shape: f32[32,256], index: 1, kind: input, shape index: {}]
  %s2 = inlined_call_operand.hbm [shape: f32[32,256], index: 2, kind: output, shape index: {0}]
  %s3 = inlined_call_operand.hbm [shape: s32[32,256], index: 3, kind: output, shape index: {1}]
  %4 = xla_tuple %s2, %s3
  %s5 = sld [smem:[#allocation0]]
  $region34: #{tpu_custom_call.1} parent=0
    _
  %s7 = ssub.s32 1, %s5
  %s8 = scalar_select 0, %s7, %s5
  $region1: #{tpu_custom_call.1} parent=0
    #allocation2 [shape = 'u8[32768]{0}', space=vmem, size = 0x8000, scoped, tag = 'input window, operand 0, single buffered']
    #allocation3 [shape = 's32[1]{0}', space=sflag, size = 0x4, scoped, tag = 'scoped memory for tpu_custom_call.1']
    #allocation4 [shape = 's32[1]{0}', space=sflag, size = 0x4, scoped, tag = 'scoped memory for tpu_custom_call.1']
    #allocation5 [shape = 'u8[32768]{0}', space=vmem, size = 0x8000, scoped, tag = 'input window, operand 1, single buffered']
    #allocation6 [shape = 's32[1]{0}', space=sflag, size = 0x4, scoped, tag = 'scoped memory for tpu_custom_call.1']
    #allocation7 [shape = 'u8[32768]{0}', space=vmem, size = 0x8000, scoped, tag = 'output window, operand 0, single buffered']
    #allocation8 [shape = 'u8[32768]{0}', space=vmem, size = 0x8000, scoped, tag = 'output window, operand 1, single buffered']
    #allocation9 [shape = 's32[1]{0}', space=sflag, size = 0x4, scoped, tag = 'scoped memory for tpu_custom_call.1']
    %9 = vsyncpa [#allocation3], 0
    %10 = vsyncpa [#allocation6], 0
    %11 = vsyncpa [#allocation4], 0
    %12 = vsyncpa [#allocation9], 0
    // Predicated region
    $region2: #{tpu_custom_call.1} parent=1 // pred_check
      _
    $region3: #{tpu_custom_call.1} parent=1 // pred_check_branch
      %14 = sbr.rel (0) target = $region5
    $region4: #{tpu_custom_call.1} parent=1 // pred_region
      %s16 = ssub.s32 1024, 1024
      %17 = vsyncadd [#allocation3], %s16
      %s18 = sshll.u32 [#allocation2], 4
      %s19 = int_to_ptr.vmem [resolvable:$true] %s18
      %24 = dma.hbm_to_vmem [thread:$0]  %s0, 1024, %s19, [#allocation3], 256, 256, 16
    $region5: #{tpu_custom_call.1} parent=1 // pred_fallthru
      _
    // Predicated region
    $region6: #{tpu_custom_call.1} parent=1 // pred_check
      _
    $region7: #{tpu_custom_call.1} parent=1 // pred_check_branch
      %26 = sbr.rel (0) target = $region9
    $region8: #{tpu_custom_call.1} parent=1 // pred_region
      %s28 = ssub.s32 1024, 1024
      %29 = vsyncadd [#allocation6], %s28
      %s30 = sshll.u32 [#allocation5], 4
      %s31 = int_to_ptr.vmem [resolvable:$true] %s30
      %36 = dma.hbm_to_vmem [thread:$0]  %s1, 1024, %s31, [#allocation6], 256, 256, 16
    $region9: #{tpu_custom_call.1} parent=1 // pred_fallthru
      _
    // Predicated region
    $region10: #{tpu_custom_call.1} parent=1 // pred_check
      _
    $region11: #{tpu_custom_call.1} parent=1 // pred_check_branch
      %38 = sbr.rel (0) target = $region13
    $region12: #{tpu_custom_call.1} parent=1 // pred_region
      %39 = dma.done [#allocation3], 1024
    $region13: #{tpu_custom_call.1} parent=1 // pred_fallthru
      _
    // Predicated region
    $region14: #{tpu_custom_call.1} parent=1 // pred_check
      _
    $region15: #{tpu_custom_call.1} parent=1 // pred_check_branch
      %41 = sbr.rel (0) target = $region17
    $region16: #{tpu_custom_call.1} parent=1 // pred_region
      %42 = dma.done [#allocation6], 1024
    $region17: #{tpu_custom_call.1} parent=1 // pred_fallthru
      _
    %v43 = vld [vmem:[#allocation2] sm:$0xff]
    %v44 = vld [vmem:[#allocation2 + $0x8] sm:$0xff]
    %v45 = vld [vmem:[#allocation2 + $0x10] sm:$0xff]
    %v46 = vld [vmem:[#allocation2 + $0x18] sm:$0xff]
    %v47 = vld [vmem:[#allocation2 + $0x20] sm:$0xff]
    %v48 = vld [vmem:[#allocation2 + $0x28] sm:$0xff]
    %v49 = vld [vmem:[#allocation2 + $0x30] sm:$0xff]
    %v50 = vld [vmem:[#allocation2 + $0x38] sm:$0xff]
    %v51 = vld [vmem:[#allocation5] sm:$0xff]
    %v52 = vld [vmem:[#allocation5 + $0x8] sm:$0xff]
    %v53 = vld [vmem:[#allocation5 + $0x10] sm:$0xff]
    %v54 = vld [vmem:[#allocation5 + $0x18] sm:$0xff]
    %v55 = vld [vmem:[#allocation5 + $0x20] sm:$0xff]
    %v56 = vld [vmem:[#allocation5 + $0x28] sm:$0xff]
    %v57 = vld [vmem:[#allocation5 + $0x30] sm:$0xff]
    %v58 = vld [vmem:[#allocation5 + $0x38] sm:$0xff]
    %v59 = vlaneseq
    %v60 = vshrl.u32 %v59, 7
    %v61 = vadd.s32 %v60, 8
    %v62 = vadd.s32 %v60, 16
    %v63 = vadd.s32 %v60, 24
    %vm64 = vcmp.lt.s32.totalorder %v60, 24
    %vm65 = vcmp.lt.s32.totalorder %v61, 24
    %vm66 = vcmp.lt.s32.totalorder %v62, 24
    %vm67 = vcmp.lt.s32.totalorder %v63, 24
    %v68 = vsel %vm64, %v43, -inf
    %v69 = vsel %vm64, %v44, -inf
    %v70 = vsel %vm65, %v45, -inf
    %v71 = vsel %vm65, %v46, -inf
    %v72 = vsel %vm66, %v47, -inf
    %v73 = vsel %vm66, %v48, -inf
    %v74 = vsel %vm67, %v49, -inf
    %v75 = vsel %vm67, %v50, -inf
    %v76 = vmax.f32 %v68, %v72
    %v77 = vmax.f32 %v70, %v74
    %v78 = vmax.f32 %v76, %v77
    %v79 = vrot.slane %v78, 4
    %v80 = vmax.f32 %v78, %v79
    %v81 = vrot.slane %v80, 2
    %v82 = vmax.f32 %v80, %v81
    %v83 = vrot.slane %v82, 1
    %v84 = vmax.f32 %v82, %v83
    %v85 = vmax.f32 %v69, %v73
    %v86 = vmax.f32 %v71, %v75
    %v87 = vmax.f32 %v85, %v86
    %v88 = vrot.slane %v87, 4
    %v89 = vmax.f32 %v87, %v88
    %v90 = vrot.slane %v89, 2
    %v91 = vmax.f32 %v89, %v90
    %v92 = vrot.slane %v91, 1
    %v93 = vmax.f32 %v91, %v92
    %v94 = vsel %vm64, %v43, inf
    %v95 = vsel %vm64, %v44, inf
    %v96 = vsel %vm65, %v45, inf
    %v97 = vsel %vm65, %v46, inf
    %v98 = vsel %vm66, %v47, inf
    %v99 = vsel %vm66, %v48, inf
    %v100 = vsel %vm67, %v49, inf
    %v101 = vsel %vm67, %v50, inf
    %v102 = vmin.f32 %v94, %v98
    %v103 = vmin.f32 %v96, %v100
    %v104 = vmin.f32 %v102, %v103
    %v105 = vrot.slane %v104, 4
    %v106 = vmin.f32 %v104, %v105
    %v107 = vrot.slane %v106, 2
    %v108 = vmin.f32 %v106, %v107
    %v109 = vrot.slane %v108, 1
    %v110 = vmin.f32 %v108, %v109
    %v111 = vmin.f32 %v95, %v99
    %v112 = vmin.f32 %v97, %v101
    %v113 = vmin.f32 %v111, %v112
    %v114 = vrot.slane %v113, 4
    %v115 = vmin.f32 %v113, %v114
    %v116 = vrot.slane %v115, 2
    %v117 = vmin.f32 %v115, %v116
    %v118 = vrot.slane %v117, 1
    %v119 = vmin.f32 %v117, %v118
    %v120 = vsub.f32 %v84, %v110
    %v121 = vsub.f32 %v93, %v119
    %v122 = vadd.f32 %v120, 1.0
    %v123 = vadd.f32 %v121, 1.0
    %v124 = vmul.f32 %v51, %v122
    %v125 = vmul.f32 %v52, %v123
    %v126 = vmul.f32 %v53, %v122
    %v127 = vmul.f32 %v54, %v123
    %v128 = vmul.f32 %v55, %v122
    %v129 = vmul.f32 %v56, %v123
    %v130 = vmul.f32 %v57, %v122
    %v131 = vmul.f32 %v58, %v123
    %v132 = vadd.f32 %v43, %v124
    %v133 = vadd.f32 %v44, %v125
    %v134 = vadd.f32 %v45, %v126
    %v135 = vadd.f32 %v46, %v127
    %v136 = vadd.f32 %v47, %v128
    %v137 = vadd.f32 %v48, %v129
    %v138 = vadd.f32 %v49, %v130
    %v139 = vadd.f32 %v50, %v131
    %v140 = vsel %vm64, %v132, inf
    %v141 = vsel %vm64, %v133, inf
    %v142 = vsel %vm65, %v134, inf
    %v143 = vsel %vm65, %v135, inf
    %v144 = vsel %vm66, %v136, inf
    %v145 = vsel %vm66, %v137, inf
    %v146 = vsel %vm67, %v138, inf
    %v147 = vsel %vm67, %v139, inf
    %v148 = vand.u32 %v60, 1
    %v149 = vand.u32 %v61, 1
    %v150 = vand.u32 %v62, 1
    %v151 = vand.u32 %v63, 1
    %vm152 = vcmp.eq.s32.totalorder %v148, 0
    %vm153 = vcmp.eq.s32.totalorder %v149, 0
    %vm154 = vcmp.eq.s32.totalorder %v150, 0
    %vm155 = vcmp.eq.s32.totalorder %v151, 0
    %v156 = vrot.slane %v140, 1
    %v157 = vrot.slane %v141, 1
    %v158 = vrot.slane %v142, 1
    %v159 = vrot.slane %v143, 1
    %v160 = vrot.slane %v144, 1
    %v161 = vrot.slane %v145, 1
    %v162 = vrot.slane %v146, 1
    %v163 = vrot.slane %v147, 1
    %vm164 = vcmp.lt.s32.totalorder %v60, 7
    %v165 = vsel %vm164, %v160, %v162
    %v166 = vsel %vm164, %v161, %v163
    %v167 = vsel %vm164, %v158, %v160
    %v168 = vsel %vm164, %v159, %v161
    %v169 = vsel %vm164, %v156, %v158
    %v170 = vsel %vm164, %v157, %v159
    %v171 = vsel %vm164, %v162, %v156
    %v172 = vsel %vm164, %v163, %v157
    %v173 = vrot.slane %v140, 7
    %v174 = vrot.slane %v141, 7
    %v175 = vrot.slane %v142, 7
    %v176 = vrot.slane %v143, 7
    %v177 = vrot.slane %v144, 7
    %v178 = vrot.slane %v145, 7
    %v179 = vrot.slane %v146, 7
    %v180 = vrot.slane %v147, 7
    %vm181 = vcmp.lt.s32.totalorder %v60, 1
    %v182 = vsel %vm181, %v177, %v179
    %v183 = vsel %vm181, %v178, %v180
    %v184 = vsel %vm181, %v175, %v177
    %v185 = vsel %vm181, %v176, %v178
    %v186 = vsel %vm181, %v173, %v175
    %v187 = vsel %vm181, %v174, %v176
    %v188 = vsel %vm181, %v179, %v173
    %v189 = vsel %vm181, %v180, %v174
    %v190 = vsel %vm152, %v169, %v188
    %v191 = vsel %vm152, %v170, %v189
    %v192 = vsel %vm153, %v167, %v186
    %v193 = vsel %vm153, %v168, %v187
    %v194 = vsel %vm154, %v165, %v184
    %v195 = vsel %vm154, %v166, %v185
    %v196 = vsel %vm155, %v171, %v182
    %v197 = vsel %vm155, %v172, %v183
    %v198 = vrot.slane %v60, 1
    %v199 = vrot.slane %v61, 1
    %v200 = vrot.slane %v62, 1
    %v201 = vrot.slane %v63, 1
    %v202 = vsel %vm164, %v200, %v201
    %v203 = vsel %vm164, %v199, %v200
    %v204 = vsel %vm164, %v198, %v199
    %v205 = vsel %vm164, %v201, %v198
    %v206 = vrot.slane %v60, 7
    %v207 = vrot.slane %v61, 7
    %v208 = vrot.slane %v62, 7
    %v209 = vrot.slane %v63, 7
    %v210 = vsel %vm181, %v208, %v209
    %v211 = vsel %vm181, %v207, %v208
    %v212 = vsel %vm181, %v206, %v207
    %v213 = vsel %vm181, %v209, %v206
    %v214 = vsel %vm152, %v204, %v213
    %v215 = vsel %vm153, %v203, %v212
    %v216 = vsel %vm154, %v202, %v211
    %v217 = vsel %vm155, %v205, %v210
    %vm218 = vcmp.lt.f32.partialorder %v140, %v190
    %vm219 = vcmp.lt.f32.partialorder %v141, %v191
    %vm220 = vcmp.lt.f32.partialorder %v142, %v192
    %vm221 = vcmp.lt.f32.partialorder %v143, %v193
    %vm222 = vcmp.lt.f32.partialorder %v144, %v194
    %vm223 = vcmp.lt.f32.partialorder %v145, %v195
    %vm224 = vcmp.lt.f32.partialorder %v146, %v196
    %vm225 = vcmp.lt.f32.partialorder %v147, %v197
    %vm226 = vcmp.eq.f32.partialorder %v140, %v190
    %vm227 = vcmp.eq.f32.partialorder %v141, %v191
    %vm228 = vcmp.eq.f32.partialorder %v142, %v192
    %vm229 = vcmp.eq.f32.partialorder %v143, %v193
    %vm230 = vcmp.eq.f32.partialorder %v144, %v194
    %vm231 = vcmp.eq.f32.partialorder %v145, %v195
    %vm232 = vcmp.eq.f32.partialorder %v146, %v196
    %vm233 = vcmp.eq.f32.partialorder %v147, %v197
    %vm234 = vcmp.lt.s32.totalorder %v60, %v214
    %vm235 = vcmp.lt.s32.totalorder %v61, %v215
    %vm236 = vcmp.lt.s32.totalorder %v62, %v216
    %vm237 = vcmp.lt.s32.totalorder %v63, %v217
    %vm238 = vmand %vm226, %vm234
    %vm239 = vmand %vm227, %vm234
    %vm240 = vmand %vm228, %vm235
    %vm241 = vmand %vm229, %vm235
    %vm242 = vmand %vm230, %vm236
    %vm243 = vmand %vm231, %vm236
    %vm244 = vmand %vm232, %vm237
    %vm245 = vmand %vm233, %vm237
    %vm246 = vmor %vm218, %vm238
    %vm247 = vmor %vm219, %vm239
    %vm248 = vmor %vm220, %vm240
    %vm249 = vmor %vm221, %vm241
    %vm250 = vmor %vm222, %vm242
    %vm251 = vmor %vm223, %vm243
    %vm252 = vmor %vm224, %vm244
    %vm253 = vmor %vm225, %vm245
    %v254 = vand.u32 %v60, 2
    %v255 = vand.u32 %v61, 2
    %v256 = vand.u32 %v62, 2
    %v257 = vand.u32 %v63, 2
    %vm258 = vcmp.ne.s32.totalorder %v254, 0
    %vm259 = vcmp.ne.s32.totalorder %v255, 0
    %vm260 = vcmp.ne.s32.totalorder %v256, 0
    %vm261 = vcmp.ne.s32.totalorder %v257, 0
    %vm262 = vmxor %vm152, %vm258
    %vm263 = vmxor %vm153, %vm259
    %vm264 = vmxor %vm154, %vm260
    %vm265 = vmxor %vm155, %vm261
    %vm266 = vmxor %vm262, %vm246
    %vm267 = vmxor %vm262, %vm247
    %vm268 = vmxor %vm263, %vm248
    %vm269 = vmxor %vm263, %vm249
    %vm270 = vmxor %vm264, %vm250
    %vm271 = vmxor %vm264, %vm251
    %vm272 = vmxor %vm265, %vm252
    %vm273 = vmxor %vm265, %vm253
    %v274 = vsel %vm266, %v190, %v140
    %v275 = vsel %vm267, %v191, %v141
    %v276 = vsel %vm268, %v192, %v142
    %v277 = vsel %vm269, %v193, %v143
    %v278 = vsel %vm270, %v194, %v144
    %v279 = vsel %vm271, %v195, %v145
    %v280 = vsel %vm272, %v196, %v146
    %v281 = vsel %vm273, %v197, %v147
    %v282 = vsel %vm266, %v214, %v60
    %v283 = vsel %vm267, %v214, %v60
    %v284 = vsel %vm268, %v215, %v61
    %v285 = vsel %vm269, %v215, %v61
    %v286 = vsel %vm270, %v216, %v62
    %v287 = vsel %vm271, %v216, %v62
    %v288 = vsel %vm272, %v217, %v63
    %v289 = vsel %vm273, %v217, %v63
    %vm290 = vcmp.eq.s32.totalorder %v254, 0
    %vm291 = vcmp.eq.s32.totalorder %v255, 0
    %vm292 = vcmp.eq.s32.totalorder %v256, 0
    %vm293 = vcmp.eq.s32.totalorder %v257, 0
    %v294 = vrot.slane %v274, 2
    %v295 = vrot.slane %v275, 2
    %v296 = vrot.slane %v276, 2
    %v297 = vrot.slane %v277, 2
    %v298 = vrot.slane %v278, 2
    %v299 = vrot.slane %v279, 2
    %v300 = vrot.slane %v280, 2
    %v301 = vrot.slane %v281, 2
    %vm302 = vcmp.lt.s32.totalorder %v60, 6
    %v303 = vsel %vm302, %v298, %v300
    %v304 = vsel %vm302, %v299, %v301
    %v305 = vsel %vm302, %v296, %v298
    %v306 = vsel %vm302, %v297, %v299
    %v307 = vsel %vm302, %v294, %v296
    %v308 = vsel %vm302, %v295, %v297
    %v309 = vsel %vm302, %v300, %v294
    %v310 = vsel %vm302, %v301, %v295
    %v311 = vrot.slane %v274, 6
    %v312 = vrot.slane %v275, 6
    %v313 = vrot.slane %v276, 6
    %v314 = vrot.slane %v277, 6
    %v315 = vrot.slane %v278, 6
    %v316 = vrot.slane %v279, 6
    %v317 = vrot.slane %v280, 6
    %v318 = vrot.slane %v281, 6
    %vm319 = vcmp.lt.s32.totalorder %v60, 2
    %v320 = vsel %vm319, %v315, %v317
    %v321 = vsel %vm319, %v316, %v318
    %v322 = vsel %vm319, %v313, %v315
    %v323 = vsel %vm319, %v314, %v316
    %v324 = vsel %vm319, %v311, %v313
    %v325 = vsel %vm319, %v312, %v314
    %v326 = vsel %vm319, %v317, %v311
    %v327 = vsel %vm319, %v318, %v312
    %v328 = vsel %vm290, %v307, %v326
    %v329 = vsel %vm290, %v308, %v327
    %v330 = vsel %vm291, %v305, %v324
    %v331 = vsel %vm291, %v306, %v325
    %v332 = vsel %vm292, %v303, %v322
    %v333 = vsel %vm292, %v304, %v323
    %v334 = vsel %vm293, %v309, %v320
    %v335 = vsel %vm293, %v310, %v321
    %v336 = vrot.slane %v282, 2
    %v337 = vrot.slane %v283, 2
    %v338 = vrot.slane %v284, 2
    %v339 = vrot.slane %v285, 2
    %v340 = vrot.slane %v286, 2
    %v341 = vrot.slane %v287, 2
    %v342 = vrot.slane %v288, 2
    %v343 = vrot.slane %v289, 2
    %v344 = vsel %vm302, %v340, %v342
    %v345 = vsel %vm302, %v341, %v343
    %v346 = vsel %vm302, %v338, %v340
    %v347 = vsel %vm302, %v339, %v341
    %v348 = vsel %vm302, %v336, %v338
    %v349 = vsel %vm302, %v337, %v339
    %v350 = vsel %vm302, %v342, %v336
    %v351 = vsel %vm302, %v343, %v337
    %v352 = vrot.slane %v282, 6
    %v353 = vrot.slane %v283, 6
    %v354 = vrot.slane %v284, 6
    %v355 = vrot.slane %v285, 6
    %v356 = vrot.slane %v286, 6
    %v357 = vrot.slane %v287, 6
    %v358 = vrot.slane %v288, 6
    %v359 = vrot.slane %v289, 6
    %v360 = vsel %vm319, %v356, %v358
    %v361 = vsel %vm319, %v357, %v359
    %v362 = vsel %vm319, %v354, %v356
    %v363 = vsel %vm319, %v355, %v357
    %v364 = vsel %vm319, %v352, %v354
    %v365 = vsel %vm319, %v353, %v355
    %v366 = vsel %vm319, %v358, %v352
    %v367 = vsel %vm319, %v359, %v353
    %v368 = vsel %vm290, %v348, %v366
    %v369 = vsel %vm290, %v349, %v367
    %v370 = vsel %vm291, %v346, %v364
    %v371 = vsel %vm291, %v347, %v365
    %v372 = vsel %vm292, %v344, %v362
    %v373 = vsel %vm292, %v345, %v363
    %v374 = vsel %vm293, %v350, %v360
    %v375 = vsel %vm293, %v351, %v361
    %vm376 = vcmp.lt.f32.partialorder %v274, %v328
    %vm377 = vcmp.lt.f32.partialorder %v275, %v329
    %vm378 = vcmp.lt.f32.partialorder %v276, %v330
    %vm379 = vcmp.lt.f32.partialorder %v277, %v331
    %vm380 = vcmp.lt.f32.partialorder %v278, %v332
    %vm381 = vcmp.lt.f32.partialorder %v279, %v333
    %vm382 = vcmp.lt.f32.partialorder %v280, %v334
    %vm383 = vcmp.lt.f32.partialorder %v281, %v335
    %vm384 = vcmp.eq.f32.partialorder %v274, %v328
    %vm385 = vcmp.eq.f32.partialorder %v275, %v329
    %vm386 = vcmp.eq.f32.partialorder %v276, %v330
    %vm387 = vcmp.eq.f32.partialorder %v277, %v331
    %vm388 = vcmp.eq.f32.partialorder %v278, %v332
    %vm389 = vcmp.eq.f32.partialorder %v279, %v333
    %vm390 = vcmp.eq.f32.partialorder %v280, %v334
    %vm391 = vcmp.eq.f32.partialorder %v281, %v335
    %vm392 = vcmp.lt.s32.totalorder %v282, %v368
    %vm393 = vcmp.lt.s32.totalorder %v283, %v369
    %vm394 = vcmp.lt.s32.totalorder %v284, %v370
    %vm395 = vcmp.lt.s32.totalorder %v285, %v371
    %vm396 = vcmp.lt.s32.totalorder %v286, %v372
    %vm397 = vcmp.lt.s32.totalorder %v287, %v373
    %vm398 = vcmp.lt.s32.totalorder %v288, %v374
    %vm399 = vcmp.lt.s32.totalorder %v289, %v375
    %vm400 = vmand %vm384, %vm392
    %vm401 = vmand %vm385, %vm393
    %vm402 = vmand %vm386, %vm394
    %vm403 = vmand %vm387, %vm395
    %vm404 = vmand %vm388, %vm396
    %vm405 = vmand %vm389, %vm397
    %vm406 = vmand %vm390, %vm398
    %vm407 = vmand %vm391, %vm399
    %vm408 = vmor %vm376, %vm400
    %vm409 = vmor %vm377, %vm401
    %vm410 = vmor %vm378, %vm402
    %vm411 = vmor %vm379, %vm403
    %vm412 = vmor %vm380, %vm404
    %vm413 = vmor %vm381, %vm405
    %vm414 = vmor %vm382, %vm406
    %vm415 = vmor %vm383, %vm407
    %v416 = vand.u32 %v60, 4
    %v417 = vand.u32 %v61, 4
    %v418 = vand.u32 %v62, 4
    %v419 = vand.u32 %v63, 4
    %vm420 = vcmp.ne.s32.totalorder %v416, 0
    %vm421 = vcmp.ne.s32.totalorder %v417, 0
    %vm422 = vcmp.ne.s32.totalorder %v418, 0
    %vm423 = vcmp.ne.s32.totalorder %v419, 0
    %vm424 = vmxor %vm290, %vm420
    %vm425 = vmxor %vm291, %vm421
    %vm426 = vmxor %vm292, %vm422
    %vm427 = vmxor %vm293, %vm423
    %vm428 = vmxor %vm424, %vm408
    %vm429 = vmxor %vm424, %vm409
    %vm430 = vmxor %vm425, %vm410
    %vm431 = vmxor %vm425, %vm411
    %vm432 = vmxor %vm426, %vm412
    %vm433 = vmxor %vm426, %vm413
    %vm434 = vmxor %vm427, %vm414
    %vm435 = vmxor %vm427, %vm415
    %v436 = vsel %vm428, %v328, %v274
    %v437 = vsel %vm429, %v329, %v275
    %v438 = vsel %vm430, %v330, %v276
    %v439 = vsel %vm431, %v331, %v277
    %v440 = vsel %vm432, %v332, %v278
    %v441 = vsel %vm433, %v333, %v279
    %v442 = vsel %vm434, %v334, %v280
    %v443 = vsel %vm435, %v335, %v281
    %v444 = vsel %vm428, %v368, %v282
    %v445 = vsel %vm429, %v369, %v283
    %v446 = vsel %vm430, %v370, %v284
    %v447 = vsel %vm431, %v371, %v285
    %v448 = vsel %vm432, %v372, %v286
    %v449 = vsel %vm433, %v373, %v287
    %v450 = vsel %vm434, %v374, %v288
    %v451 = vsel %vm435, %v375, %v289
    %v452 = vrot.slane %v436, 1
    %v453 = vrot.slane %v437, 1
    %v454 = vrot.slane %v438, 1
    %v455 = vrot.slane %v439, 1
    %v456 = vrot.slane %v440, 1
    %v457 = vrot.slane %v441, 1
    %v458 = vrot.slane %v442, 1
    %v459 = vrot.slane %v443, 1
    %v460 = vsel %vm164, %v456, %v458
    %v461 = vsel %vm164, %v457, %v459
    %v462 = vsel %vm164, %v454, %v456
    %v463 = vsel %vm164, %v455, %v457
    %v464 = vsel %vm164, %v452, %v454
    %v465 = vsel %vm164, %v453, %v455
    %v466 = vsel %vm164, %v458, %v452
    %v467 = vsel %vm164, %v459, %v453
    %v468 = vrot.slane %v436, 7
    %v469 = vrot.slane %v437, 7
    %v470 = vrot.slane %v438, 7
    %v471 = vrot.slane %v439, 7
    %v472 = vrot.slane %v440, 7
    %v473 = vrot.slane %v441, 7
    %v474 = vrot.slane %v442, 7
    %v475 = vrot.slane %v443, 7
    %v476 = vsel %vm181, %v472, %v474
    %v477 = vsel %vm181, %v473, %v475
    %v478 = vsel %vm181, %v470, %v472
    %v479 = vsel %vm181, %v471, %v473
    %v480 = vsel %vm181, %v468, %v470
    %v481 = vsel %vm181, %v469, %v471
    %v482 = vsel %vm181, %v474, %v468
    %v483 = vsel %vm181, %v475, %v469
    %v484 = vsel %vm152, %v464, %v482
    %v485 = vsel %vm152, %v465, %v483
    %v486 = vsel %vm153, %v462, %v480
    %v487 = vsel %vm153, %v463, %v481
    %v488 = vsel %vm154, %v460, %v478
    %v489 = vsel %vm154, %v461, %v479
    %v490 = vsel %vm155, %v466, %v476
    %v491 = vsel %vm155, %v467, %v477
    %v492 = vrot.slane %v444, 1
    %v493 = vrot.slane %v445, 1
    %v494 = vrot.slane %v446, 1
    %v495 = vrot.slane %v447, 1
    %v496 = vrot.slane %v448, 1
    %v497 = vrot.slane %v449, 1
    %v498 = vrot.slane %v450, 1
    %v499 = vrot.slane %v451, 1
    %v500 = vsel %vm164, %v496, %v498
    %v501 = vsel %vm164, %v497, %v499
    %v502 = vsel %vm164, %v494, %v496
    %v503 = vsel %vm164, %v495, %v497
    %v504 = vsel %vm164, %v492, %v494
    %v505 = vsel %vm164, %v493, %v495
    %v506 = vsel %vm164, %v498, %v492
    %v507 = vsel %vm164, %v499, %v493
    %v508 = vrot.slane %v444, 7
    %v509 = vrot.slane %v445, 7
    %v510 = vrot.slane %v446, 7
    %v511 = vrot.slane %v447, 7
    %v512 = vrot.slane %v448, 7
    %v513 = vrot.slane %v449, 7
    %v514 = vrot.slane %v450, 7
    %v515 = vrot.slane %v451, 7
    %v516 = vsel %vm181, %v512, %v514
    %v517 = vsel %vm181, %v513, %v515
    %v518 = vsel %vm181, %v510, %v512
    %v519 = vsel %vm181, %v511, %v513
    %v520 = vsel %vm181, %v508, %v510
    %v521 = vsel %vm181, %v509, %v511
    %v522 = vsel %vm181, %v514, %v508
    %v523 = vsel %vm181, %v515, %v509
    %v524 = vsel %vm152, %v504, %v522
    %v525 = vsel %vm152, %v505, %v523
    %v526 = vsel %vm153, %v502, %v520
    %v527 = vsel %vm153, %v503, %v521
    %v528 = vsel %vm154, %v500, %v518
    %v529 = vsel %vm154, %v501, %v519
    %v530 = vsel %vm155, %v506, %v516
    %v531 = vsel %vm155, %v507, %v517
    %vm532 = vcmp.lt.f32.partialorder %v436, %v484
    %vm533 = vcmp.lt.f32.partialorder %v437, %v485
    %vm534 = vcmp.lt.f32.partialorder %v438, %v486
    %vm535 = vcmp.lt.f32.partialorder %v439, %v487
    %vm536 = vcmp.lt.f32.partialorder %v440, %v488
    %vm537 = vcmp.lt.f32.partialorder %v441, %v489
    %vm538 = vcmp.lt.f32.partialorder %v442, %v490
    %vm539 = vcmp.lt.f32.partialorder %v443, %v491
    %vm540 = vcmp.eq.f32.partialorder %v436, %v484
    %vm541 = vcmp.eq.f32.partialorder %v437, %v485
    %vm542 = vcmp.eq.f32.partialorder %v438, %v486
    %vm543 = vcmp.eq.f32.partialorder %v439, %v487
    %vm544 = vcmp.eq.f32.partialorder %v440, %v488
    %vm545 = vcmp.eq.f32.partialorder %v441, %v489
    %vm546 = vcmp.eq.f32.partialorder %v442, %v490
    %vm547 = vcmp.eq.f32.partialorder %v443, %v491
    %vm548 = vcmp.lt.s32.totalorder %v444, %v524
    %vm549 = vcmp.lt.s32.totalorder %v445, %v525
    %vm550 = vcmp.lt.s32.totalorder %v446, %v526
    %vm551 = vcmp.lt.s32.totalorder %v447, %v527
    %vm552 = vcmp.lt.s32.totalorder %v448, %v528
    %vm553 = vcmp.lt.s32.totalorder %v449, %v529
    %vm554 = vcmp.lt.s32.totalorder %v450, %v530
    %vm555 = vcmp.lt.s32.totalorder %v451, %v531
    %vm556 = vmand %vm540, %vm548
    %vm557 = vmand %vm541, %vm549
    %vm558 = vmand %vm542, %vm550
    %vm559 = vmand %vm543, %vm551
    %vm560 = vmand %vm544, %vm552
    %vm561 = vmand %vm545, %vm553
    %vm562 = vmand %vm546, %vm554
    %vm563 = vmand %vm547, %vm555
    %vm564 = vmor %vm532, %vm556
    %vm565 = vmor %vm533, %vm557
    %vm566 = vmor %vm534, %vm558
    %vm567 = vmor %vm535, %vm559
    %vm568 = vmor %vm536, %vm560
    %vm569 = vmor %vm537, %vm561
    %vm570 = vmor %vm538, %vm562
    %vm571 = vmor %vm539, %vm563
    %vm572 = vmxor %vm152, %vm420
    %vm573 = vmxor %vm153, %vm421
    %vm574 = vmxor %vm154, %vm422
    %vm575 = vmxor %vm155, %vm423
    %vm576 = vmxor %vm572, %vm564
    %vm577 = vmxor %vm572, %vm565
    %vm578 = vmxor %vm573, %vm566
    %vm579 = vmxor %vm573, %vm567
    %vm580 = vmxor %vm574, %vm568
    %vm581 = vmxor %vm574, %vm569
    %vm582 = vmxor %vm575, %vm570
    %vm583 = vmxor %vm575, %vm571
    %v584 = vsel %vm576, %v484, %v436
    %v585 = vsel %vm577, %v485, %v437
    %v586 = vsel %vm578, %v486, %v438
    %v587 = vsel %vm579, %v487, %v439
    %v588 = vsel %vm580, %v488, %v440
    %v589 = vsel %vm581, %v489, %v441
    %v590 = vsel %vm582, %v490, %v442
    %v591 = vsel %vm583, %v491, %v443
    %v592 = vsel %vm576, %v524, %v444
    %v593 = vsel %vm577, %v525, %v445
    %v594 = vsel %vm578, %v526, %v446
    %v595 = vsel %vm579, %v527, %v447
    %v596 = vsel %vm580, %v528, %v448
    %v597 = vsel %vm581, %v529, %v449
    %v598 = vsel %vm582, %v530, %v450
    %v599 = vsel %vm583, %v531, %v451
    %vm600 = vcmp.eq.s32.totalorder %v416, 0
    %vm601 = vcmp.eq.s32.totalorder %v417, 0
    %vm602 = vcmp.eq.s32.totalorder %v418, 0
    %vm603 = vcmp.eq.s32.totalorder %v419, 0
    %v604 = vrot.slane %v584, 4
    %v605 = vrot.slane %v585, 4
    %v606 = vrot.slane %v586, 4
    %v607 = vrot.slane %v587, 4
    %v608 = vrot.slane %v588, 4
    %v609 = vrot.slane %v589, 4
    %v610 = vrot.slane %v590, 4
    %v611 = vrot.slane %v591, 4
    %vm612 = vcmp.lt.s32.totalorder %v60, 4
    %v613 = vsel %vm612, %v608, %v610
    %v614 = vsel %vm612, %v609, %v611
    %v615 = vsel %vm612, %v606, %v608
    %v616 = vsel %vm612, %v607, %v609
    %v617 = vsel %vm612, %v604, %v606
    %v618 = vsel %vm612, %v605, %v607
    %v619 = vsel %vm612, %v610, %v604
    %v620 = vsel %vm612, %v611, %v605
    %v621 = vsel %vm600, %v617, %v619
    %v622 = vsel %vm600, %v618, %v620
    %v623 = vsel %vm601, %v615, %v617
    %v624 = vsel %vm601, %v616, %v618
    %v625 = vsel %vm602, %v613, %v615
    %v626 = vsel %vm602, %v614, %v616
    %v627 = vsel %vm603, %v619, %v613
    %v628 = vsel %vm603, %v620, %v614
    %v629 = vrot.slane %v592, 4
    %v630 = vrot.slane %v593, 4
    %v631 = vrot.slane %v594, 4
    %v632 = vrot.slane %v595, 4
    %v633 = vrot.slane %v596, 4
    %v634 = vrot.slane %v597, 4
    %v635 = vrot.slane %v598, 4
    %v636 = vrot.slane %v599, 4
    %v637 = vsel %vm612, %v633, %v635
    %v638 = vsel %vm612, %v634, %v636
    %v639 = vsel %vm612, %v631, %v633
    %v640 = vsel %vm612, %v632, %v634
    %v641 = vsel %vm612, %v629, %v631
    %v642 = vsel %vm612, %v630, %v632
    %v643 = vsel %vm612, %v635, %v629
    %v644 = vsel %vm612, %v636, %v630
    %v645 = vsel %vm600, %v641, %v643
    %v646 = vsel %vm600, %v642, %v644
    %v647 = vsel %vm601, %v639, %v641
    %v648 = vsel %vm601, %v640, %v642
    %v649 = vsel %vm602, %v637, %v639
    %v650 = vsel %vm602, %v638, %v640
    %v651 = vsel %vm603, %v643, %v637
    %v652 = vsel %vm603, %v644, %v638
    %vm653 = vcmp.lt.f32.partialorder %v584, %v621
    %vm654 = vcmp.lt.f32.partialorder %v585, %v622
    %vm655 = vcmp.lt.f32.partialorder %v586, %v623
    %vm656 = vcmp.lt.f32.partialorder %v587, %v624
    %vm657 = vcmp.lt.f32.partialorder %v588, %v625
    %vm658 = vcmp.lt.f32.partialorder %v589, %v626
    %vm659 = vcmp.lt.f32.partialorder %v590, %v627
    %vm660 = vcmp.lt.f32.partialorder %v591, %v628
    %vm661 = vcmp.eq.f32.partialorder %v584, %v621
    %vm662 = vcmp.eq.f32.partialorder %v585, %v622
    %vm663 = vcmp.eq.f32.partialorder %v586, %v623
    %vm664 = vcmp.eq.f32.partialorder %v587, %v624
    %vm665 = vcmp.eq.f32.partialorder %v588, %v625
    %vm666 = vcmp.eq.f32.partialorder %v589, %v626
    %vm667 = vcmp.eq.f32.partialorder %v590, %v627
    %vm668 = vcmp.eq.f32.partialorder %v591, %v628
    %vm669 = vcmp.lt.s32.totalorder %v592, %v645
    %vm670 = vcmp.lt.s32.totalorder %v593, %v646
    %vm671 = vcmp.lt.s32.totalorder %v594, %v647
    %vm672 = vcmp.lt.s32.totalorder %v595, %v648
    %vm673 = vcmp.lt.s32.totalorder %v596, %v649
    %vm674 = vcmp.lt.s32.totalorder %v597, %v650
    %vm675 = vcmp.lt.s32.totalorder %v598, %v651
    %vm676 = vcmp.lt.s32.totalorder %v599, %v652
    %vm677 = vmand %vm661, %vm669
    %vm678 = vmand %vm662, %vm670
    %vm679 = vmand %vm663, %vm671
    %vm680 = vmand %vm664, %vm672
    %vm681 = vmand %vm665, %vm673
    %vm682 = vmand %vm666, %vm674
    %vm683 = vmand %vm667, %vm675
    %vm684 = vmand %vm668, %vm676
    %vm685 = vmor %vm653, %vm677
    %vm686 = vmor %vm654, %vm678
    %vm687 = vmor %vm655, %vm679
    %vm688 = vmor %vm656, %vm680
    %vm689 = vmor %vm657, %vm681
    %vm690 = vmor %vm658, %vm682
    %vm691 = vmor %vm659, %vm683
    %vm692 = vmor %vm660, %vm684
    %v693 = vand.u32 %v60, 8
    %v694 = vand.u32 %v61, 8
    %v695 = vand.u32 %v62, 8
    %v696 = vand.u32 %v63, 8
    %vm697 = vcmp.ne.s32.totalorder %v693, 0
    %vm698 = vcmp.ne.s32.totalorder %v694, 0
    %vm699 = vcmp.ne.s32.totalorder %v695, 0
    %vm700 = vcmp.ne.s32.totalorder %v696, 0
    %vm701 = vmxor %vm600, %vm697
    %vm702 = vmxor %vm601, %vm698
    %vm703 = vmxor %vm602, %vm699
    %vm704 = vmxor %vm603, %vm700
    %vm705 = vmxor %vm701, %vm685
    %vm706 = vmxor %vm701, %vm686
    %vm707 = vmxor %vm702, %vm687
    %vm708 = vmxor %vm702, %vm688
    %vm709 = vmxor %vm703, %vm689
    %vm710 = vmxor %vm703, %vm690
    %vm711 = vmxor %vm704, %vm691
    %vm712 = vmxor %vm704, %vm692
    %v713 = vsel %vm705, %v621, %v584
    %v714 = vsel %vm706, %v622, %v585
    %v715 = vsel %vm707, %v623, %v586
    %v716 = vsel %vm708, %v624, %v587
    %v717 = vsel %vm709, %v625, %v588
    %v718 = vsel %vm710, %v626, %v589
    %v719 = vsel %vm711, %v627, %v590
    %v720 = vsel %vm712, %v628, %v591
    %v721 = vsel %vm705, %v645, %v592
    %v722 = vsel %vm706, %v646, %v593
    %v723 = vsel %vm707, %v647, %v594
    %v724 = vsel %vm708, %v648, %v595
    %v725 = vsel %vm709, %v649, %v596
    %v726 = vsel %vm710, %v650, %v597
    %v727 = vsel %vm711, %v651, %v598
    %v728 = vsel %vm712, %v652, %v599
    %v729 = vrot.slane %v713, 2
    %v730 = vrot.slane %v714, 2
    %v731 = vrot.slane %v715, 2
    %v732 = vrot.slane %v716, 2
    %v733 = vrot.slane %v717, 2
    %v734 = vrot.slane %v718, 2
    %v735 = vrot.slane %v719, 2
    %v736 = vrot.slane %v720, 2
    %v737 = vsel %vm302, %v733, %v735
    %v738 = vsel %vm302, %v734, %v736
    %v739 = vsel %vm302, %v731, %v733
    %v740 = vsel %vm302, %v732, %v734
    %v741 = vsel %vm302, %v729, %v731
    %v742 = vsel %vm302, %v730, %v732
    %v743 = vsel %vm302, %v735, %v729
    %v744 = vsel %vm302, %v736, %v730
    %v745 = vrot.slane %v713, 6
    %v746 = vrot.slane %v714, 6
    %v747 = vrot.slane %v715, 6
    %v748 = vrot.slane %v716, 6
    %v749 = vrot.slane %v717, 6
    %v750 = vrot.slane %v718, 6
    %v751 = vrot.slane %v719, 6
    %v752 = vrot.slane %v720, 6
    %v753 = vsel %vm319, %v749, %v751
    %v754 = vsel %vm319, %v750, %v752
    %v755 = vsel %vm319, %v747, %v749
    %v756 = vsel %vm319, %v748, %v750
    %v757 = vsel %vm319, %v745, %v747
    %v758 = vsel %vm319, %v746, %v748
    %v759 = vsel %vm319, %v751, %v745
    %v760 = vsel %vm319, %v752, %v746
    %v761 = vsel %vm290, %v741, %v759
    %v762 = vsel %vm290, %v742, %v760
    %v763 = vsel %vm291, %v739, %v757
    %v764 = vsel %vm291, %v740, %v758
    %v765 = vsel %vm292, %v737, %v755
    %v766 = vsel %vm292, %v738, %v756
    %v767 = vsel %vm293, %v743, %v753
    %v768 = vsel %vm293, %v744, %v754
    %v769 = vrot.slane %v721, 2
    %v770 = vrot.slane %v722, 2
    %v771 = vrot.slane %v723, 2
    %v772 = vrot.slane %v724, 2
    %v773 = vrot.slane %v725, 2
    %v774 = vrot.slane %v726, 2
    %v775 = vrot.slane %v727, 2
    %v776 = vrot.slane %v728, 2
    %v777 = vsel %vm302, %v773, %v775
    %v778 = vsel %vm302, %v774, %v776
    %v779 = vsel %vm302, %v771, %v773
    %v780 = vsel %vm302, %v772, %v774
    %v781 = vsel %vm302, %v769, %v771
    %v782 = vsel %vm302, %v770, %v772
    %v783 = vsel %vm302, %v775, %v769
    %v784 = vsel %vm302, %v776, %v770
    %v785 = vrot.slane %v721, 6
    %v786 = vrot.slane %v722, 6
    %v787 = vrot.slane %v723, 6
    %v788 = vrot.slane %v724, 6
    %v789 = vrot.slane %v725, 6
    %v790 = vrot.slane %v726, 6
    %v791 = vrot.slane %v727, 6
    %v792 = vrot.slane %v728, 6
    %v793 = vsel %vm319, %v789, %v791
    %v794 = vsel %vm319, %v790, %v792
    %v795 = vsel %vm319, %v787, %v789
    %v796 = vsel %vm319, %v788, %v790
    %v797 = vsel %vm319, %v785, %v787
    %v798 = vsel %vm319, %v786, %v788
    %v799 = vsel %vm319, %v791, %v785
    %v800 = vsel %vm319, %v792, %v786
    %v801 = vsel %vm290, %v781, %v799
    %v802 = vsel %vm290, %v782, %v800
    %v803 = vsel %vm291, %v779, %v797
    %v804 = vsel %vm291, %v780, %v798
    %v805 = vsel %vm292, %v777, %v795
    %v806 = vsel %vm292, %v778, %v796
    %v807 = vsel %vm293, %v783, %v793
    %v808 = vsel %vm293, %v784, %v794
    %vm809 = vcmp.lt.f32.partialorder %v713, %v761
    %vm810 = vcmp.lt.f32.partialorder %v714, %v762
    %vm811 = vcmp.lt.f32.partialorder %v715, %v763
    %vm812 = vcmp.lt.f32.partialorder %v716, %v764
    %vm813 = vcmp.lt.f32.partialorder %v717, %v765
    %vm814 = vcmp.lt.f32.partialorder %v718, %v766
    %vm815 = vcmp.lt.f32.partialorder %v719, %v767
    %vm816 = vcmp.lt.f32.partialorder %v720, %v768
    %vm817 = vcmp.eq.f32.partialorder %v713, %v761
    %vm818 = vcmp.eq.f32.partialorder %v714, %v762
    %vm819 = vcmp.eq.f32.partialorder %v715, %v763
    %vm820 = vcmp.eq.f32.partialorder %v716, %v764
    %vm821 = vcmp.eq.f32.partialorder %v717, %v765
    %vm822 = vcmp.eq.f32.partialorder %v718, %v766
    %vm823 = vcmp.eq.f32.partialorder %v719, %v767
    %vm824 = vcmp.eq.f32.partialorder %v720, %v768
    %vm825 = vcmp.lt.s32.totalorder %v721, %v801
    %vm826 = vcmp.lt.s32.totalorder %v722, %v802
    %vm827 = vcmp.lt.s32.totalorder %v723, %v803
    %vm828 = vcmp.lt.s32.totalorder %v724, %v804
    %vm829 = vcmp.lt.s32.totalorder %v725, %v805
    %vm830 = vcmp.lt.s32.totalorder %v726, %v806
    %vm831 = vcmp.lt.s32.totalorder %v727, %v807
    %vm832 = vcmp.lt.s32.totalorder %v728, %v808
    %vm833 = vmand %vm817, %vm825
    %vm834 = vmand %vm818, %vm826
    %vm835 = vmand %vm819, %vm827
    %vm836 = vmand %vm820, %vm828
    %vm837 = vmand %vm821, %vm829
    %vm838 = vmand %vm822, %vm830
    %vm839 = vmand %vm823, %vm831
    %vm840 = vmand %vm824, %vm832
    %vm841 = vmor %vm809, %vm833
    %vm842 = vmor %vm810, %vm834
    %vm843 = vmor %vm811, %vm835
    %vm844 = vmor %vm812, %vm836
    %vm845 = vmor %vm813, %vm837
    %vm846 = vmor %vm814, %vm838
    %vm847 = vmor %vm815, %vm839
    %vm848 = vmor %vm816, %vm840
    %vm849 = vmxor %vm290, %vm697
    %vm850 = vmxor %vm291, %vm698
    %vm851 = vmxor %vm292, %vm699
    %vm852 = vmxor %vm293, %vm700
    %vm853 = vmxor %vm849, %vm841
    %vm854 = vmxor %vm849, %vm842
    %vm855 = vmxor %vm850, %vm843
    %vm856 = vmxor %vm850, %vm844
    %vm857 = vmxor %vm851, %vm845
    %vm858 = vmxor %vm851, %vm846
    %vm859 = vmxor %vm852, %vm847
    %vm860 = vmxor %vm852, %vm848
    %v861 = vsel %vm853, %v761, %v713
    %v862 = vsel %vm854, %v762, %v714
    %v863 = vsel %vm855, %v763, %v715
    %v864 = vsel %vm856, %v764, %v716
    %v865 = vsel %vm857, %v765, %v717
    %v866 = vsel %vm858, %v766, %v718
    %v867 = vsel %vm859, %v767, %v719
    %v868 = vsel %vm860, %v768, %v720
    %v869 = vsel %vm853, %v801, %v721
    %v870 = vsel %vm854, %v802, %v722
    %v871 = vsel %vm855, %v803, %v723
    %v872 = vsel %vm856, %v804, %v724
    %v873 = vsel %vm857, %v805, %v725
    %v874 = vsel %vm858, %v806, %v726
    %v875 = vsel %vm859, %v807, %v727
    %v876 = vsel %vm860, %v808, %v728
    %v877 = vrot.slane %v861, 1
    %v878 = vrot.slane %v862, 1
    %v879 = vrot.slane %v863, 1
    %v880 = vrot.slane %v864, 1
    %v881 = vrot.slane %v865, 1
    %v882 = vrot.slane %v866, 1
    %v883 = vrot.slane %v867, 1
    %v884 = vrot.slane %v868, 1
    %v885 = vsel %vm164, %v881, %v883
    %v886 = vsel %vm164, %v882, %v884
    %v887 = vsel %vm164, %v879, %v881
    %v888 = vsel %vm164, %v880, %v882
    %v889 = vsel %vm164, %v877, %v879
    %v890 = vsel %vm164, %v878, %v880
    %v891 = vsel %vm164, %v883, %v877
    %v892 = vsel %vm164, %v884, %v878
    %v893 = vrot.slane %v861, 7
    %v894 = vrot.slane %v862, 7
    %v895 = vrot.slane %v863, 7
    %v896 = vrot.slane %v864, 7
    %v897 = vrot.slane %v865, 7
    %v898 = vrot.slane %v866, 7
    %v899 = vrot.slane %v867, 7
    %v900 = vrot.slane %v868, 7
    %v901 = vsel %vm181, %v897, %v899
    %v902 = vsel %vm181, %v898, %v900
    %v903 = vsel %vm181, %v895, %v897
    %v904 = vsel %vm181, %v896, %v898
    %v905 = vsel %vm181, %v893, %v895
    %v906 = vsel %vm181, %v894, %v896
    %v907 = vsel %vm181, %v899, %v893
    %v908 = vsel %vm181, %v900, %v894
    %v909 = vsel %vm152, %v889, %v907
    %v910 = vsel %vm152, %v890, %v908
    %v911 = vsel %vm153, %v887, %v905
    %v912 = vsel %vm153, %v888, %v906
    %v913 = vsel %vm154, %v885, %v903
    %v914 = vsel %vm154, %v886, %v904
    %v915 = vsel %vm155, %v891, %v901
    %v916 = vsel %vm155, %v892, %v902
    %v917 = vrot.slane %v869, 1
    %v918 = vrot.slane %v870, 1
    %v919 = vrot.slane %v871, 1
    %v920 = vrot.slane %v872, 1
    %v921 = vrot.slane %v873, 1
    %v922 = vrot.slane %v874, 1
    %v923 = vrot.slane %v875, 1
    %v924 = vrot.slane %v876, 1
    %v925 = vsel %vm164, %v921, %v923
    %v926 = vsel %vm164, %v922, %v924
    %v927 = vsel %vm164, %v919, %v921
    %v928 = vsel %vm164, %v920, %v922
    %v929 = vsel %vm164, %v917, %v919
    %v930 = vsel %vm164, %v918, %v920
    %v931 = vsel %vm164, %v923, %v917
    %v932 = vsel %vm164, %v924, %v918
    %v933 = vrot.slane %v869, 7
    %v934 = vrot.slane %v870, 7
    %v935 = vrot.slane %v871, 7
    %v936 = vrot.slane %v872, 7
    %v937 = vrot.slane %v873, 7
    %v938 = vrot.slane %v874, 7
    %v939 = vrot.slane %v875, 7
    %v940 = vrot.slane %v876, 7
    %v941 = vsel %vm181, %v937, %v939
    %v942 = vsel %vm181, %v938, %v940
    %v943 = vsel %vm181, %v935, %v937
    %v944 = vsel %vm181, %v936, %v938
    %v945 = vsel %vm181, %v933, %v935
    %v946 = vsel %vm181, %v934, %v936
    %v947 = vsel %vm181, %v939, %v933
    %v948 = vsel %vm181, %v940, %v934
    %v949 = vsel %vm152, %v929, %v947
    %v950 = vsel %vm152, %v930, %v948
    %v951 = vsel %vm153, %v927, %v945
    %v952 = vsel %vm153, %v928, %v946
    %v953 = vsel %vm154, %v925, %v943
    %v954 = vsel %vm154, %v926, %v944
    %v955 = vsel %vm155, %v931, %v941
    %v956 = vsel %vm155, %v932, %v942
    %vm957 = vcmp.lt.f32.partialorder %v861, %v909
    %vm958 = vcmp.lt.f32.partialorder %v862, %v910
    %vm959 = vcmp.lt.f32.partialorder %v863, %v911
    %vm960 = vcmp.lt.f32.partialorder %v864, %v912
    %vm961 = vcmp.lt.f32.partialorder %v865, %v913
    %vm962 = vcmp.lt.f32.partialorder %v866, %v914
    %vm963 = vcmp.lt.f32.partialorder %v867, %v915
    %vm964 = vcmp.lt.f32.partialorder %v868, %v916
    %vm965 = vcmp.eq.f32.partialorder %v861, %v909
    %vm966 = vcmp.eq.f32.partialorder %v862, %v910
    %vm967 = vcmp.eq.f32.partialorder %v863, %v911
    %vm968 = vcmp.eq.f32.partialorder %v864, %v912
    %vm969 = vcmp.eq.f32.partialorder %v865, %v913
    %vm970 = vcmp.eq.f32.partialorder %v866, %v914
    %vm971 = vcmp.eq.f32.partialorder %v867, %v915
    %vm972 = vcmp.eq.f32.partialorder %v868, %v916
    %vm973 = vcmp.lt.s32.totalorder %v869, %v949
    %vm974 = vcmp.lt.s32.totalorder %v870, %v950
    %vm975 = vcmp.lt.s32.totalorder %v871, %v951
    %vm976 = vcmp.lt.s32.totalorder %v872, %v952
    %vm977 = vcmp.lt.s32.totalorder %v873, %v953
    %vm978 = vcmp.lt.s32.totalorder %v874, %v954
    %vm979 = vcmp.lt.s32.totalorder %v875, %v955
    %vm980 = vcmp.lt.s32.totalorder %v876, %v956
    %vm981 = vmand %vm965, %vm973
    %vm982 = vmand %vm966, %vm974
    %vm983 = vmand %vm967, %vm975
    %vm984 = vmand %vm968, %vm976
    %vm985 = vmand %vm969, %vm977
    %vm986 = vmand %vm970, %vm978
    %vm987 = vmand %vm971, %vm979
    %vm988 = vmand %vm972, %vm980
    %vm989 = vmor %vm957, %vm981
    %vm990 = vmor %vm958, %vm982
    %vm991 = vmor %vm959, %vm983
    %vm992 = vmor %vm960, %vm984
    %vm993 = vmor %vm961, %vm985
    %vm994 = vmor %vm962, %vm986
    %vm995 = vmor %vm963, %vm987
    %vm996 = vmor %vm964, %vm988
    %vm997 = vmxor %vm152, %vm697
    %vm998 = vmxor %vm153, %vm698
    %vm999 = vmxor %vm154, %vm699
    %vm1000 = vmxor %vm155, %vm700
    %vm1001 = vmxor %vm997, %vm989
    %vm1002 = vmxor %vm997, %vm990
    %vm1003 = vmxor %vm998, %vm991
    %vm1004 = vmxor %vm998, %vm992
    %vm1005 = vmxor %vm999, %vm993
    %vm1006 = vmxor %vm999, %vm994
    %vm1007 = vmxor %vm1000, %vm995
    %vm1008 = vmxor %vm1000, %vm996
    %v1009 = vsel %vm1001, %v909, %v861
    %v1010 = vsel %vm1002, %v910, %v862
    %v1011 = vsel %vm1003, %v911, %v863
    %v1012 = vsel %vm1004, %v912, %v864
    %v1013 = vsel %vm1005, %v913, %v865
    %v1014 = vsel %vm1006, %v914, %v866
    %v1015 = vsel %vm1007, %v915, %v867
    %v1016 = vsel %vm1008, %v916, %v868
    %v1017 = vsel %vm1001, %v949, %v869
    %v1018 = vsel %vm1002, %v950, %v870
    %v1019 = vsel %vm1003, %v951, %v871
    %v1020 = vsel %vm1004, %v952, %v872
    %v1021 = vsel %vm1005, %v953, %v873
    %v1022 = vsel %vm1006, %v954, %v874
    %v1023 = vsel %vm1007, %v955, %v875
    %v1024 = vsel %vm1008, %v956, %v876
    %vm1025 = vcmp.eq.s32.totalorder %v693, 0
    %vm1026 = vcmp.eq.s32.totalorder %v694, 0
    %vm1027 = vcmp.eq.s32.totalorder %v695, 0
    %vm1028 = vcmp.eq.s32.totalorder %v696, 0
    %v1029 = vsel %vm1025, %v1011, %v1015
    %v1030 = vsel %vm1025, %v1012, %v1016
    %v1031 = vsel %vm1026, %v1013, %v1009
    %v1032 = vsel %vm1026, %v1014, %v1010
    %v1033 = vsel %vm1027, %v1015, %v1011
    %v1034 = vsel %vm1027, %v1016, %v1012
    %v1035 = vsel %vm1028, %v1009, %v1013
    %v1036 = vsel %vm1028, %v1010, %v1014
    %v1037 = vsel %vm1025, %v1019, %v1023
    %v1038 = vsel %vm1025, %v1020, %v1024
    %v1039 = vsel %vm1026, %v1021, %v1017
    %v1040 = vsel %vm1026, %v1022, %v1018
    %v1041 = vsel %vm1027, %v1023, %v1019
    %v1042 = vsel %vm1027, %v1024, %v1020
    %v1043 = vsel %vm1028, %v1017, %v1021
    %v1044 = vsel %vm1028, %v1018, %v1022
    %vm1045 = vcmp.lt.f32.partialorder %v1009, %v1029
    %vm1046 = vcmp.lt.f32.partialorder %v1010, %v1030
    %vm1047 = vcmp.lt.f32.partialorder %v1011, %v1031
    %vm1048 = vcmp.lt.f32.partialorder %v1012, %v1032
    %vm1049 = vcmp.lt.f32.partialorder %v1013, %v1033
    %vm1050 = vcmp.lt.f32.partialorder %v1014, %v1034
    %vm1051 = vcmp.lt.f32.partialorder %v1015, %v1035
    %vm1052 = vcmp.lt.f32.partialorder %v1016, %v1036
    %vm1053 = vcmp.eq.f32.partialorder %v1009, %v1029
    %vm1054 = vcmp.eq.f32.partialorder %v1010, %v1030
    %vm1055 = vcmp.eq.f32.partialorder %v1011, %v1031
    %vm1056 = vcmp.eq.f32.partialorder %v1012, %v1032
    %vm1057 = vcmp.eq.f32.partialorder %v1013, %v1033
    %vm1058 = vcmp.eq.f32.partialorder %v1014, %v1034
    %vm1059 = vcmp.eq.f32.partialorder %v1015, %v1035
    %vm1060 = vcmp.eq.f32.partialorder %v1016, %v1036
    %vm1061 = vcmp.lt.s32.totalorder %v1017, %v1037
    %vm1062 = vcmp.lt.s32.totalorder %v1018, %v1038
    %vm1063 = vcmp.lt.s32.totalorder %v1019, %v1039
    %vm1064 = vcmp.lt.s32.totalorder %v1020, %v1040
    %vm1065 = vcmp.lt.s32.totalorder %v1021, %v1041
    %vm1066 = vcmp.lt.s32.totalorder %v1022, %v1042
    %vm1067 = vcmp.lt.s32.totalorder %v1023, %v1043
    %vm1068 = vcmp.lt.s32.totalorder %v1024, %v1044
    %vm1069 = vmand %vm1053, %vm1061
    %vm1070 = vmand %vm1054, %vm1062
    %vm1071 = vmand %vm1055, %vm1063
    %vm1072 = vmand %vm1056, %vm1064
    %vm1073 = vmand %vm1057, %vm1065
    %vm1074 = vmand %vm1058, %vm1066
    %vm1075 = vmand %vm1059, %vm1067
    %vm1076 = vmand %vm1060, %vm1068
    %vm1077 = vmor %vm1045, %vm1069
    %vm1078 = vmor %vm1046, %vm1070
    %vm1079 = vmor %vm1047, %vm1071
    %vm1080 = vmor %vm1048, %vm1072
    %vm1081 = vmor %vm1049, %vm1073
    %vm1082 = vmor %vm1050, %vm1074
    %vm1083 = vmor %vm1051, %vm1075
    %vm1084 = vmor %vm1052, %vm1076
    %v1085 = vand.u32 %v60, 16
    %v1086 = vand.u32 %v61, 16
    %v1087 = vand.u32 %v62, 16
    %v1088 = vand.u32 %v63, 16
    %vm1089 = vcmp.ne.s32.totalorder %v1085, 0
    %vm1090 = vcmp.ne.s32.totalorder %v1086, 0
    %vm1091 = vcmp.ne.s32.totalorder %v1087, 0
    %vm1092 = vcmp.ne.s32.totalorder %v1088, 0
    %vm1093 = vmxor %vm1025, %vm1089
    %vm1094 = vmxor %vm1026, %vm1090
    %vm1095 = vmxor %vm1027, %vm1091
    %vm1096 = vmxor %vm1028, %vm1092
    %vm1097 = vmxor %vm1093, %vm1077
    %vm1098 = vmxor %vm1093, %vm1078
    %vm1099 = vmxor %vm1094, %vm1079
    %vm1100 = vmxor %vm1094, %vm1080
    %vm1101 = vmxor %vm1095, %vm1081
    %vm1102 = vmxor %vm1095, %vm1082
    %vm1103 = vmxor %vm1096, %vm1083
    %vm1104 = vmxor %vm1096, %vm1084
    %v1105 = vsel %vm1097, %v1029, %v1009
    %v1106 = vsel %vm1098, %v1030, %v1010
    %v1107 = vsel %vm1099, %v1031, %v1011
    %v1108 = vsel %vm1100, %v1032, %v1012
    %v1109 = vsel %vm1101, %v1033, %v1013
    %v1110 = vsel %vm1102, %v1034, %v1014
    %v1111 = vsel %vm1103, %v1035, %v1015
    %v1112 = vsel %vm1104, %v1036, %v1016
    %v1113 = vsel %vm1097, %v1037, %v1017
    %v1114 = vsel %vm1098, %v1038, %v1018
    %v1115 = vsel %vm1099, %v1039, %v1019
    %v1116 = vsel %vm1100, %v1040, %v1020
    %v1117 = vsel %vm1101, %v1041, %v1021
    %v1118 = vsel %vm1102, %v1042, %v1022
    %v1119 = vsel %vm1103, %v1043, %v1023
    %v1120 = vsel %vm1104, %v1044, %v1024
    %v1121 = vrot.slane %v1105, 4
    %v1122 = vrot.slane %v1106, 4
    %v1123 = vrot.slane %v1107, 4
    %v1124 = vrot.slane %v1108, 4
    %v1125 = vrot.slane %v1109, 4
    %v1126 = vrot.slane %v1110, 4
    %v1127 = vrot.slane %v1111, 4
    %v1128 = vrot.slane %v1112, 4
    %v1129 = vsel %vm612, %v1125, %v1127
    %v1130 = vsel %vm612, %v1126, %v1128
    %v1131 = vsel %vm612, %v1123, %v1125
    %v1132 = vsel %vm612, %v1124, %v1126
    %v1133 = vsel %vm612, %v1121, %v1123
    %v1134 = vsel %vm612, %v1122, %v1124
    %v1135 = vsel %vm612, %v1127, %v1121
    %v1136 = vsel %vm612, %v1128, %v1122
    %v1137 = vsel %vm600, %v1133, %v1135
    %v1138 = vsel %vm600, %v1134, %v1136
    %v1139 = vsel %vm601, %v1131, %v1133
    %v1140 = vsel %vm601, %v1132, %v1134
    %v1141 = vsel %vm602, %v1129, %v1131
    %v1142 = vsel %vm602, %v1130, %v1132
    %v1143 = vsel %vm603, %v1135, %v1129
    %v1144 = vsel %vm603, %v1136, %v1130
    %v1145 = vrot.slane %v1113, 4
    %v1146 = vrot.slane %v1114, 4
    %v1147 = vrot.slane %v1115, 4
    %v1148 = vrot.slane %v1116, 4
    %v1149 = vrot.slane %v1117, 4
    %v1150 = vrot.slane %v1118, 4
    %v1151 = vrot.slane %v1119, 4
    %v1152 = vrot.slane %v1120, 4
    %v1153 = vsel %vm612, %v1149, %v1151
    %v1154 = vsel %vm612, %v1150, %v1152
    %v1155 = vsel %vm612, %v1147, %v1149
    %v1156 = vsel %vm612, %v1148, %v1150
    %v1157 = vsel %vm612, %v1145, %v1147
    %v1158 = vsel %vm612, %v1146, %v1148
    %v1159 = vsel %vm612, %v1151, %v1145
    %v1160 = vsel %vm612, %v1152, %v1146
    %v1161 = vsel %vm600, %v1157, %v1159
    %v1162 = vsel %vm600, %v1158, %v1160
    %v1163 = vsel %vm601, %v1155, %v1157
    %v1164 = vsel %vm601, %v1156, %v1158
    %v1165 = vsel %vm602, %v1153, %v1155
    %v1166 = vsel %vm602, %v1154, %v1156
    %v1167 = vsel %vm603, %v1159, %v1153
    %v1168 = vsel %vm603, %v1160, %v1154
    %vm1169 = vcmp.lt.f32.partialorder %v1105, %v1137
    %vm1170 = vcmp.lt.f32.partialorder %v1106, %v1138
    %vm1171 = vcmp.lt.f32.partialorder %v1107, %v1139
    %vm1172 = vcmp.lt.f32.partialorder %v1108, %v1140
    %vm1173 = vcmp.lt.f32.partialorder %v1109, %v1141
    %vm1174 = vcmp.lt.f32.partialorder %v1110, %v1142
    %vm1175 = vcmp.lt.f32.partialorder %v1111, %v1143
    %vm1176 = vcmp.lt.f32.partialorder %v1112, %v1144
    %vm1177 = vcmp.eq.f32.partialorder %v1105, %v1137
    %vm1178 = vcmp.eq.f32.partialorder %v1106, %v1138
    %vm1179 = vcmp.eq.f32.partialorder %v1107, %v1139
    %vm1180 = vcmp.eq.f32.partialorder %v1108, %v1140
    %vm1181 = vcmp.eq.f32.partialorder %v1109, %v1141
    %vm1182 = vcmp.eq.f32.partialorder %v1110, %v1142
    %vm1183 = vcmp.eq.f32.partialorder %v1111, %v1143
    %vm1184 = vcmp.eq.f32.partialorder %v1112, %v1144
    %vm1185 = vcmp.lt.s32.totalorder %v1113, %v1161
    %vm1186 = vcmp.lt.s32.totalorder %v1114, %v1162
    %vm1187 = vcmp.lt.s32.totalorder %v1115, %v1163
    %vm1188 = vcmp.lt.s32.totalorder %v1116, %v1164
    %vm1189 = vcmp.lt.s32.totalorder %v1117, %v1165
    %vm1190 = vcmp.lt.s32.totalorder %v1118, %v1166
    %vm1191 = vcmp.lt.s32.totalorder %v1119, %v1167
    %vm1192 = vcmp.lt.s32.totalorder %v1120, %v1168
    %vm1193 = vmand %vm1177, %vm1185
    %vm1194 = vmand %vm1178, %vm1186
    %vm1195 = vmand %vm1179, %vm1187
    %vm1196 = vmand %vm1180, %vm1188
    %vm1197 = vmand %vm1181, %vm1189
    %vm1198 = vmand %vm1182, %vm1190
    %vm1199 = vmand %vm1183, %vm1191
    %vm1200 = vmand %vm1184, %vm1192
    %vm1201 = vmor %vm1169, %vm1193
    %vm1202 = vmor %vm1170, %vm1194
    %vm1203 = vmor %vm1171, %vm1195
    %vm1204 = vmor %vm1172, %vm1196
    %vm1205 = vmor %vm1173, %vm1197
    %vm1206 = vmor %vm1174, %vm1198
    %vm1207 = vmor %vm1175, %vm1199
    %vm1208 = vmor %vm1176, %vm1200
    %vm1209 = vmxor %vm600, %vm1089
    %vm1210 = vmxor %vm601, %vm1090
    %vm1211 = vmxor %vm602, %vm1091
    %vm1212 = vmxor %vm603, %vm1092
    %vm1213 = vmxor %vm1209, %vm1201
    %vm1214 = vmxor %vm1209, %vm1202
    %vm1215 = vmxor %vm1210, %vm1203
    %vm1216 = vmxor %vm1210, %vm1204
    %vm1217 = vmxor %vm1211, %vm1205
    %vm1218 = vmxor %vm1211, %vm1206
    %vm1219 = vmxor %vm1212, %vm1207
    %vm1220 = vmxor %vm1212, %vm1208
    %v1221 = vsel %vm1213, %v1137, %v1105
    %v1222 = vsel %vm1214, %v1138, %v1106
    %v1223 = vsel %vm1215, %v1139, %v1107
    %v1224 = vsel %vm1216, %v1140, %v1108
    %v1225 = vsel %vm1217, %v1141, %v1109
    %v1226 = vsel %vm1218, %v1142, %v1110
    %v1227 = vsel %vm1219, %v1143, %v1111
    %v1228 = vsel %vm1220, %v1144, %v1112
    %v1229 = vsel %vm1213, %v1161, %v1113
    %v1230 = vsel %vm1214, %v1162, %v1114
    %v1231 = vsel %vm1215, %v1163, %v1115
    %v1232 = vsel %vm1216, %v1164, %v1116
    %v1233 = vsel %vm1217, %v1165, %v1117
    %v1234 = vsel %vm1218, %v1166, %v1118
    %v1235 = vsel %vm1219, %v1167, %v1119
    %v1236 = vsel %vm1220, %v1168, %v1120
    %v1237 = vrot.slane %v1221, 2
    %v1238 = vrot.slane %v1222, 2
    %v1239 = vrot.slane %v1223, 2
    %v1240 = vrot.slane %v1224, 2
    %v1241 = vrot.slane %v1225, 2
    %v1242 = vrot.slane %v1226, 2
    %v1243 = vrot.slane %v1227, 2
    %v1244 = vrot.slane %v1228, 2
    %v1245 = vsel %vm302, %v1241, %v1243
    %v1246 = vsel %vm302, %v1242, %v1244
    %v1247 = vsel %vm302, %v1239, %v1241
    %v1248 = vsel %vm302, %v1240, %v1242
    %v1249 = vsel %vm302, %v1237, %v1239
    %v1250 = vsel %vm302, %v1238, %v1240
    %v1251 = vsel %vm302, %v1243, %v1237
    %v1252 = vsel %vm302, %v1244, %v1238
    %v1253 = vrot.slane %v1221, 6
    %v1254 = vrot.slane %v1222, 6
    %v1255 = vrot.slane %v1223, 6
    %v1256 = vrot.slane %v1224, 6
    %v1257 = vrot.slane %v1225, 6
    %v1258 = vrot.slane %v1226, 6
    %v1259 = vrot.slane %v1227, 6
    %v1260 = vrot.slane %v1228, 6
    %v1261 = vsel %vm319, %v1257, %v1259
    %v1262 = vsel %vm319, %v1258, %v1260
    %v1263 = vsel %vm319, %v1255, %v1257
    %v1264 = vsel %vm319, %v1256, %v1258
    %v1265 = vsel %vm319, %v1253, %v1255
    %v1266 = vsel %vm319, %v1254, %v1256
    %v1267 = vsel %vm319, %v1259, %v1253
    %v1268 = vsel %vm319, %v1260, %v1254
    %v1269 = vsel %vm290, %v1249, %v1267
    %v1270 = vsel %vm290, %v1250, %v1268
    %v1271 = vsel %vm291, %v1247, %v1265
    %v1272 = vsel %vm291, %v1248, %v1266
    %v1273 = vsel %vm292, %v1245, %v1263
    %v1274 = vsel %vm292, %v1246, %v1264
    %v1275 = vsel %vm293, %v1251, %v1261
    %v1276 = vsel %vm293, %v1252, %v1262
    %v1277 = vrot.slane %v1229, 2
    %v1278 = vrot.slane %v1230, 2
    %v1279 = vrot.slane %v1231, 2
    %v1280 = vrot.slane %v1232, 2
    %v1281 = vrot.slane %v1233, 2
    %v1282 = vrot.slane %v1234, 2
    %v1283 = vrot.slane %v1235, 2
    %v1284 = vrot.slane %v1236, 2
    %v1285 = vsel %vm302, %v1281, %v1283
    %v1286 = vsel %vm302, %v1282, %v1284
    %v1287 = vsel %vm302, %v1279, %v1281
    %v1288 = vsel %vm302, %v1280, %v1282
    %v1289 = vsel %vm302, %v1277, %v1279
    %v1290 = vsel %vm302, %v1278, %v1280
    %v1291 = vsel %vm302, %v1283, %v1277
    %v1292 = vsel %vm302, %v1284, %v1278
    %v1293 = vrot.slane %v1229, 6
    %v1294 = vrot.slane %v1230, 6
    %v1295 = vrot.slane %v1231, 6
    %v1296 = vrot.slane %v1232, 6
    %v1297 = vrot.slane %v1233, 6
    %v1298 = vrot.slane %v1234, 6
    %v1299 = vrot.slane %v1235, 6
    %v1300 = vrot.slane %v1236, 6
    %v1301 = vsel %vm319, %v1297, %v1299
    %v1302 = vsel %vm319, %v1298, %v1300
    %v1303 = vsel %vm319, %v1295, %v1297
    %v1304 = vsel %vm319, %v1296, %v1298
    %v1305 = vsel %vm319, %v1293, %v1295
    %v1306 = vsel %vm319, %v1294, %v1296
    %v1307 = vsel %vm319, %v1299, %v1293
    %v1308 = vsel %vm319, %v1300, %v1294
    %v1309 = vsel %vm290, %v1289, %v1307
    %v1310 = vsel %vm290, %v1290, %v1308
    %v1311 = vsel %vm291, %v1287, %v1305
    %v1312 = vsel %vm291, %v1288, %v1306
    %v1313 = vsel %vm292, %v1285, %v1303
    %v1314 = vsel %vm292, %v1286, %v1304
    %v1315 = vsel %vm293, %v1291, %v1301
    %v1316 = vsel %vm293, %v1292, %v1302
    %vm1317 = vcmp.lt.f32.partialorder %v1221, %v1269
    %vm1318 = vcmp.lt.f32.partialorder %v1222, %v1270
    %vm1319 = vcmp.lt.f32.partialorder %v1223, %v1271
    %vm1320 = vcmp.lt.f32.partialorder %v1224, %v1272
    %vm1321 = vcmp.lt.f32.partialorder %v1225, %v1273
    %vm1322 = vcmp.lt.f32.partialorder %v1226, %v1274
    %vm1323 = vcmp.lt.f32.partialorder %v1227, %v1275
    %vm1324 = vcmp.lt.f32.partialorder %v1228, %v1276
    %vm1325 = vcmp.eq.f32.partialorder %v1221, %v1269
    %vm1326 = vcmp.eq.f32.partialorder %v1222, %v1270
    %vm1327 = vcmp.eq.f32.partialorder %v1223, %v1271
    %vm1328 = vcmp.eq.f32.partialorder %v1224, %v1272
    %vm1329 = vcmp.eq.f32.partialorder %v1225, %v1273
    %vm1330 = vcmp.eq.f32.partialorder %v1226, %v1274
    %vm1331 = vcmp.eq.f32.partialorder %v1227, %v1275
    %vm1332 = vcmp.eq.f32.partialorder %v1228, %v1276
    %vm1333 = vcmp.lt.s32.totalorder %v1229, %v1309
    %vm1334 = vcmp.lt.s32.totalorder %v1230, %v1310
    %vm1335 = vcmp.lt.s32.totalorder %v1231, %v1311
    %vm1336 = vcmp.lt.s32.totalorder %v1232, %v1312
    %vm1337 = vcmp.lt.s32.totalorder %v1233, %v1313
    %vm1338 = vcmp.lt.s32.totalorder %v1234, %v1314
    %vm1339 = vcmp.lt.s32.totalorder %v1235, %v1315
    %vm1340 = vcmp.lt.s32.totalorder %v1236, %v1316
    %vm1341 = vmand %vm1325, %vm1333
    %vm1342 = vmand %vm1326, %vm1334
    %vm1343 = vmand %vm1327, %vm1335
    %vm1344 = vmand %vm1328, %vm1336
    %vm1345 = vmand %vm1329, %vm1337
    %vm1346 = vmand %vm1330, %vm1338
    %vm1347 = vmand %vm1331, %vm1339
    %vm1348 = vmand %vm1332, %vm1340
    %vm1349 = vmor %vm1317, %vm1341
    %vm1350 = vmor %vm1318, %vm1342
    %vm1351 = vmor %vm1319, %vm1343
    %vm1352 = vmor %vm1320, %vm1344
    %vm1353 = vmor %vm1321, %vm1345
    %vm1354 = vmor %vm1322, %vm1346
    %vm1355 = vmor %vm1323, %vm1347
    %vm1356 = vmor %vm1324, %vm1348
    %vm1357 = vmxor %vm290, %vm1089
    %vm1358 = vmxor %vm291, %vm1090
    %vm1359 = vmxor %vm292, %vm1091
    %vm1360 = vmxor %vm293, %vm1092
    %vm1361 = vmxor %vm1357, %vm1349
    %vm1362 = vmxor %vm1357, %vm1350
    %vm1363 = vmxor %vm1358, %vm1351
    %vm1364 = vmxor %vm1358, %vm1352
    %vm1365 = vmxor %vm1359, %vm1353
    %vm1366 = vmxor %vm1359, %vm1354
    %vm1367 = vmxor %vm1360, %vm1355
    %vm1368 = vmxor %vm1360, %vm1356
    %v1369 = vsel %vm1361, %v1269, %v1221
    %v1370 = vsel %vm1362, %v1270, %v1222
    %v1371 = vsel %vm1363, %v1271, %v1223
    %v1372 = vsel %vm1364, %v1272, %v1224
    %v1373 = vsel %vm1365, %v1273, %v1225
    %v1374 = vsel %vm1366, %v1274, %v1226
    %v1375 = vsel %vm1367, %v1275, %v1227
    %v1376 = vsel %vm1368, %v1276, %v1228
    %v1377 = vsel %vm1361, %v1309, %v1229
    %v1378 = vsel %vm1362, %v1310, %v1230
    %v1379 = vsel %vm1363, %v1311, %v1231
    %v1380 = vsel %vm1364, %v1312, %v1232
    %v1381 = vsel %vm1365, %v1313, %v1233
    %v1382 = vsel %vm1366, %v1314, %v1234
    %v1383 = vsel %vm1367, %v1315, %v1235
    %v1384 = vsel %vm1368, %v1316, %v1236
    %v1385 = vrot.slane %v1369, 1
    %v1386 = vrot.slane %v1370, 1
    %v1387 = vrot.slane %v1371, 1
    %v1388 = vrot.slane %v1372, 1
    %v1389 = vrot.slane %v1373, 1
    %v1390 = vrot.slane %v1374, 1
    %v1391 = vrot.slane %v1375, 1
    %v1392 = vrot.slane %v1376, 1
    %v1393 = vsel %vm164, %v1389, %v1391
    %v1394 = vsel %vm164, %v1390, %v1392
    %v1395 = vsel %vm164, %v1387, %v1389
    %v1396 = vsel %vm164, %v1388, %v1390
    %v1397 = vsel %vm164, %v1385, %v1387
    %v1398 = vsel %vm164, %v1386, %v1388
    %v1399 = vsel %vm164, %v1391, %v1385
    %v1400 = vsel %vm164, %v1392, %v1386
    %v1401 = vrot.slane %v1369, 7
    %v1402 = vrot.slane %v1370, 7
    %v1403 = vrot.slane %v1371, 7
    %v1404 = vrot.slane %v1372, 7
    %v1405 = vrot.slane %v1373, 7
    %v1406 = vrot.slane %v1374, 7
    %v1407 = vrot.slane %v1375, 7
    %v1408 = vrot.slane %v1376, 7
    %v1409 = vsel %vm181, %v1405, %v1407
    %v1410 = vsel %vm181, %v1406, %v1408
    %v1411 = vsel %vm181, %v1403, %v1405
    %v1412 = vsel %vm181, %v1404, %v1406
    %v1413 = vsel %vm181, %v1401, %v1403
    %v1414 = vsel %vm181, %v1402, %v1404
    %v1415 = vsel %vm181, %v1407, %v1401
    %v1416 = vsel %vm181, %v1408, %v1402
    %v1417 = vsel %vm152, %v1397, %v1415
    %v1418 = vsel %vm152, %v1398, %v1416
    %v1419 = vsel %vm153, %v1395, %v1413
    %v1420 = vsel %vm153, %v1396, %v1414
    %v1421 = vsel %vm154, %v1393, %v1411
    %v1422 = vsel %vm154, %v1394, %v1412
    %v1423 = vsel %vm155, %v1399, %v1409
    %v1424 = vsel %vm155, %v1400, %v1410
    %v1425 = vrot.slane %v1377, 1
    %v1426 = vrot.slane %v1378, 1
    %v1427 = vrot.slane %v1379, 1
    %v1428 = vrot.slane %v1380, 1
    %v1429 = vrot.slane %v1381, 1
    %v1430 = vrot.slane %v1382, 1
    %v1431 = vrot.slane %v1383, 1
    %v1432 = vrot.slane %v1384, 1
    %v1433 = vsel %vm164, %v1429, %v1431
    %v1434 = vsel %vm164, %v1430, %v1432
    %v1435 = vsel %vm164, %v1427, %v1429
    %v1436 = vsel %vm164, %v1428, %v1430
    %v1437 = vsel %vm164, %v1425, %v1427
    %v1438 = vsel %vm164, %v1426, %v1428
    %v1439 = vsel %vm164, %v1431, %v1425
    %v1440 = vsel %vm164, %v1432, %v1426
    %v1441 = vrot.slane %v1377, 7
    %v1442 = vrot.slane %v1378, 7
    %v1443 = vrot.slane %v1379, 7
    %v1444 = vrot.slane %v1380, 7
    %v1445 = vrot.slane %v1381, 7
    %v1446 = vrot.slane %v1382, 7
    %v1447 = vrot.slane %v1383, 7
    %v1448 = vrot.slane %v1384, 7
    %v1449 = vsel %vm181, %v1445, %v1447
    %v1450 = vsel %vm181, %v1446, %v1448
    %v1451 = vsel %vm181, %v1443, %v1445
    %v1452 = vsel %vm181, %v1444, %v1446
    %v1453 = vsel %vm181, %v1441, %v1443
    %v1454 = vsel %vm181, %v1442, %v1444
    %v1455 = vsel %vm181, %v1447, %v1441
    %v1456 = vsel %vm181, %v1448, %v1442
    %v1457 = vsel %vm152, %v1437, %v1455
    %v1458 = vsel %vm152, %v1438, %v1456
    %v1459 = vsel %vm153, %v1435, %v1453
    %v1460 = vsel %vm153, %v1436, %v1454
    %v1461 = vsel %vm154, %v1433, %v1451
    %v1462 = vsel %vm154, %v1434, %v1452
    %v1463 = vsel %vm155, %v1439, %v1449
    %v1464 = vsel %vm155, %v1440, %v1450
    %vm1465 = vcmp.lt.f32.partialorder %v1369, %v1417
    %vm1466 = vcmp.lt.f32.partialorder %v1370, %v1418
    %vm1467 = vcmp.lt.f32.partialorder %v1371, %v1419
    %vm1468 = vcmp.lt.f32.partialorder %v1372, %v1420
    %vm1469 = vcmp.lt.f32.partialorder %v1373, %v1421
    %vm1470 = vcmp.lt.f32.partialorder %v1374, %v1422
    %vm1471 = vcmp.lt.f32.partialorder %v1375, %v1423
    %vm1472 = vcmp.lt.f32.partialorder %v1376, %v1424
    %vm1473 = vcmp.eq.f32.partialorder %v1369, %v1417
    %vm1474 = vcmp.eq.f32.partialorder %v1370, %v1418
    %vm1475 = vcmp.eq.f32.partialorder %v1371, %v1419
    %vm1476 = vcmp.eq.f32.partialorder %v1372, %v1420
    %vm1477 = vcmp.eq.f32.partialorder %v1373, %v1421
    %vm1478 = vcmp.eq.f32.partialorder %v1374, %v1422
    %vm1479 = vcmp.eq.f32.partialorder %v1375, %v1423
    %vm1480 = vcmp.eq.f32.partialorder %v1376, %v1424
    %vm1481 = vcmp.lt.s32.totalorder %v1377, %v1457
    %vm1482 = vcmp.lt.s32.totalorder %v1378, %v1458
    %vm1483 = vcmp.lt.s32.totalorder %v1379, %v1459
    %vm1484 = vcmp.lt.s32.totalorder %v1380, %v1460
    %vm1485 = vcmp.lt.s32.totalorder %v1381, %v1461
    %vm1486 = vcmp.lt.s32.totalorder %v1382, %v1462
    %vm1487 = vcmp.lt.s32.totalorder %v1383, %v1463
    %vm1488 = vcmp.lt.s32.totalorder %v1384, %v1464
    %vm1489 = vmand %vm1473, %vm1481
    %vm1490 = vmand %vm1474, %vm1482
    %vm1491 = vmand %vm1475, %vm1483
    %vm1492 = vmand %vm1476, %vm1484
    %vm1493 = vmand %vm1477, %vm1485
    %vm1494 = vmand %vm1478, %vm1486
    %vm1495 = vmand %vm1479, %vm1487
    %vm1496 = vmand %vm1480, %vm1488
    %vm1497 = vmor %vm1465, %vm1489
    %vm1498 = vmor %vm1466, %vm1490
    %vm1499 = vmor %vm1467, %vm1491
    %vm1500 = vmor %vm1468, %vm1492
    %vm1501 = vmor %vm1469, %vm1493
    %vm1502 = vmor %vm1470, %vm1494
    %vm1503 = vmor %vm1471, %vm1495
    %vm1504 = vmor %vm1472, %vm1496
    %vm1505 = vmxor %vm152, %vm1089
    %vm1506 = vmxor %vm153, %vm1090
    %vm1507 = vmxor %vm154, %vm1091
    %vm1508 = vmxor %vm155, %vm1092
    %vm1509 = vmxor %vm1505, %vm1497
    %vm1510 = vmxor %vm1505, %vm1498
    %vm1511 = vmxor %vm1506, %vm1499
    %vm1512 = vmxor %vm1506, %vm1500
    %vm1513 = vmxor %vm1507, %vm1501
    %vm1514 = vmxor %vm1507, %vm1502
    %vm1515 = vmxor %vm1508, %vm1503
    %vm1516 = vmxor %vm1508, %vm1504
    %v1517 = vsel %vm1509, %v1417, %v1369
    %v1518 = vsel %vm1510, %v1418, %v1370
    %v1519 = vsel %vm1511, %v1419, %v1371
    %v1520 = vsel %vm1512, %v1420, %v1372
    %v1521 = vsel %vm1513, %v1421, %v1373
    %v1522 = vsel %vm1514, %v1422, %v1374
    %v1523 = vsel %vm1515, %v1423, %v1375
    %v1524 = vsel %vm1516, %v1424, %v1376
    %v1525 = vsel %vm1509, %v1457, %v1377
    %v1526 = vsel %vm1510, %v1458, %v1378
    %v1527 = vsel %vm1511, %v1459, %v1379
    %v1528 = vsel %vm1512, %v1460, %v1380
    %v1529 = vsel %vm1513, %v1461, %v1381
    %v1530 = vsel %vm1514, %v1462, %v1382
    %v1531 = vsel %vm1515, %v1463, %v1383
    %v1532 = vsel %vm1516, %v1464, %v1384
    %vm1533 = vcmp.eq.s32.totalorder %v1085, 0
    %vm1534 = vcmp.eq.s32.totalorder %v1086, 0
    %vm1535 = vcmp.eq.s32.totalorder %v1087, 0
    %vm1536 = vcmp.eq.s32.totalorder %v1088, 0
    %vm1537 = vcmp.lt.f32.partialorder %v1517, %v1521
    %vm1538 = vcmp.lt.f32.partialorder %v1518, %v1522
    %vm1539 = vcmp.lt.f32.partialorder %v1519, %v1523
    %vm1540 = vcmp.lt.f32.partialorder %v1520, %v1524
    %vm1541 = vcmp.lt.f32.partialorder %v1521, %v1517
    %vm1542 = vcmp.lt.f32.partialorder %v1522, %v1518
    %vm1543 = vcmp.lt.f32.partialorder %v1523, %v1519
    %vm1544 = vcmp.lt.f32.partialorder %v1524, %v1520
    %vm1545 = vcmp.eq.f32.partialorder %v1517, %v1521
    %vm1546 = vcmp.eq.f32.partialorder %v1518, %v1522
    %vm1547 = vcmp.eq.f32.partialorder %v1519, %v1523
    %vm1548 = vcmp.eq.f32.partialorder %v1520, %v1524
    %vm1549 = vcmp.eq.f32.partialorder %v1521, %v1517
    %vm1550 = vcmp.eq.f32.partialorder %v1522, %v1518
    %vm1551 = vcmp.eq.f32.partialorder %v1523, %v1519
    %vm1552 = vcmp.eq.f32.partialorder %v1524, %v1520
    %vm1553 = vcmp.lt.s32.totalorder %v1525, %v1529
    %vm1554 = vcmp.lt.s32.totalorder %v1526, %v1530
    %vm1555 = vcmp.lt.s32.totalorder %v1527, %v1531
    %vm1556 = vcmp.lt.s32.totalorder %v1528, %v1532
    %vm1557 = vcmp.lt.s32.totalorder %v1529, %v1525
    %vm1558 = vcmp.lt.s32.totalorder %v1530, %v1526
    %vm1559 = vcmp.lt.s32.totalorder %v1531, %v1527
    %vm1560 = vcmp.lt.s32.totalorder %v1532, %v1528
    %vm1561 = vmand %vm1545, %vm1553
    %vm1562 = vmand %vm1546, %vm1554
    %vm1563 = vmand %vm1547, %vm1555
    %vm1564 = vmand %vm1548, %vm1556
    %vm1565 = vmand %vm1549, %vm1557
    %vm1566 = vmand %vm1550, %vm1558
    %vm1567 = vmand %vm1551, %vm1559
    %vm1568 = vmand %vm1552, %vm1560
    %vm1569 = vmor %vm1537, %vm1561
    %vm1570 = vmor %vm1538, %vm1562
    %vm1571 = vmor %vm1539, %vm1563
    %vm1572 = vmor %vm1540, %vm1564
    %vm1573 = vmor %vm1541, %vm1565
    %vm1574 = vmor %vm1542, %vm1566
    %vm1575 = vmor %vm1543, %vm1567
    %vm1576 = vmor %vm1544, %vm1568
    %v1577 = vand.u32 %v60, 32
    %v1578 = vand.u32 %v61, 32
    %v1579 = vand.u32 %v62, 32
    %v1580 = vand.u32 %v63, 32
    %vm1581 = vcmp.ne.s32.totalorder %v1577, 0
    %vm1582 = vcmp.ne.s32.totalorder %v1578, 0
    %vm1583 = vcmp.ne.s32.totalorder %v1579, 0
    %vm1584 = vcmp.ne.s32.totalorder %v1580, 0
    %vm1585 = vmxor %vm1533, %vm1581
    %vm1586 = vmxor %vm1534, %vm1582
    %vm1587 = vmxor %vm1535, %vm1583
    %vm1588 = vmxor %vm1536, %vm1584
    %vm1589 = vmxor %vm1585, %vm1569
    %vm1590 = vmxor %vm1585, %vm1570
    %vm1591 = vmxor %vm1586, %vm1571
    %vm1592 = vmxor %vm1586, %vm1572
    %vm1593 = vmxor %vm1587, %vm1573
    %vm1594 = vmxor %vm1587, %vm1574
    %vm1595 = vmxor %vm1588, %vm1575
    %vm1596 = vmxor %vm1588, %vm1576
    %v1597 = vsel %vm1589, %v1521, %v1517
    %v1598 = vsel %vm1590, %v1522, %v1518
    %v1599 = vsel %vm1591, %v1523, %v1519
    %v1600 = vsel %vm1592, %v1524, %v1520
    %v1601 = vsel %vm1593, %v1517, %v1521
    %v1602 = vsel %vm1594, %v1518, %v1522
    %v1603 = vsel %vm1595, %v1519, %v1523
    %v1604 = vsel %vm1596, %v1520, %v1524
    %v1605 = vsel %vm1589, %v1529, %v1525
    %v1606 = vsel %vm1590, %v1530, %v1526
    %v1607 = vsel %vm1591, %v1531, %v1527
    %v1608 = vsel %vm1592, %v1532, %v1528
    %v1609 = vsel %vm1593, %v1525, %v1529
    %v1610 = vsel %vm1594, %v1526, %v1530
    %v1611 = vsel %vm1595, %v1527, %v1531
    %v1612 = vsel %vm1596, %v1528, %v1532
    %v1613 = vsel %vm1025, %v1599, %v1603
    %v1614 = vsel %vm1025, %v1600, %v1604
    %v1615 = vsel %vm1026, %v1601, %v1597
    %v1616 = vsel %vm1026, %v1602, %v1598
    %v1617 = vsel %vm1027, %v1603, %v1599
    %v1618 = vsel %vm1027, %v1604, %v1600
    %v1619 = vsel %vm1028, %v1597, %v1601
    %v1620 = vsel %vm1028, %v1598, %v1602
    %v1621 = vsel %vm1025, %v1607, %v1611
    %v1622 = vsel %vm1025, %v1608, %v1612
    %v1623 = vsel %vm1026, %v1609, %v1605
    %v1624 = vsel %vm1026, %v1610, %v1606
    %v1625 = vsel %vm1027, %v1611, %v1607
    %v1626 = vsel %vm1027, %v1612, %v1608
    %v1627 = vsel %vm1028, %v1605, %v1609
    %v1628 = vsel %vm1028, %v1606, %v1610
    %vm1629 = vcmp.lt.f32.partialorder %v1597, %v1613
    %vm1630 = vcmp.lt.f32.partialorder %v1598, %v1614
    %vm1631 = vcmp.lt.f32.partialorder %v1599, %v1615
    %vm1632 = vcmp.lt.f32.partialorder %v1600, %v1616
    %vm1633 = vcmp.lt.f32.partialorder %v1601, %v1617
    %vm1634 = vcmp.lt.f32.partialorder %v1602, %v1618
    %vm1635 = vcmp.lt.f32.partialorder %v1603, %v1619
    %vm1636 = vcmp.lt.f32.partialorder %v1604, %v1620
    %vm1637 = vcmp.eq.f32.partialorder %v1597, %v1613
    %vm1638 = vcmp.eq.f32.partialorder %v1598, %v1614
    %vm1639 = vcmp.eq.f32.partialorder %v1599, %v1615
    %vm1640 = vcmp.eq.f32.partialorder %v1600, %v1616
    %vm1641 = vcmp.eq.f32.partialorder %v1601, %v1617
    %vm1642 = vcmp.eq.f32.partialorder %v1602, %v1618
    %vm1643 = vcmp.eq.f32.partialorder %v1603, %v1619
    %vm1644 = vcmp.eq.f32.partialorder %v1604, %v1620
    %vm1645 = vcmp.lt.s32.totalorder %v1605, %v1621
    %vm1646 = vcmp.lt.s32.totalorder %v1606, %v1622
    %vm1647 = vcmp.lt.s32.totalorder %v1607, %v1623
    %vm1648 = vcmp.lt.s32.totalorder %v1608, %v1624
    %vm1649 = vcmp.lt.s32.totalorder %v1609, %v1625
    %vm1650 = vcmp.lt.s32.totalorder %v1610, %v1626
    %vm1651 = vcmp.lt.s32.totalorder %v1611, %v1627
    %vm1652 = vcmp.lt.s32.totalorder %v1612, %v1628
    %vm1653 = vmand %vm1637, %vm1645
    %vm1654 = vmand %vm1638, %vm1646
    %vm1655 = vmand %vm1639, %vm1647
    %vm1656 = vmand %vm1640, %vm1648
    %vm1657 = vmand %vm1641, %vm1649
    %vm1658 = vmand %vm1642, %vm1650
    %vm1659 = vmand %vm1643, %vm1651
    %vm1660 = vmand %vm1644, %vm1652
    %vm1661 = vmor %vm1629, %vm1653
    %vm1662 = vmor %vm1630, %vm1654
    %vm1663 = vmor %vm1631, %vm1655
    %vm1664 = vmor %vm1632, %vm1656
    %vm1665 = vmor %vm1633, %vm1657
    %vm1666 = vmor %vm1634, %vm1658
    %vm1667 = vmor %vm1635, %vm1659
    %vm1668 = vmor %vm1636, %vm1660
    %vm1669 = vmxor %vm1025, %vm1581
    %vm1670 = vmxor %vm1026, %vm1582
    %vm1671 = vmxor %vm1027, %vm1583
    %vm1672 = vmxor %vm1028, %vm1584
    %vm1673 = vmxor %vm1669, %vm1661
    %vm1674 = vmxor %vm1669, %vm1662
    %vm1675 = vmxor %vm1670, %vm1663
    %vm1676 = vmxor %vm1670, %vm1664
    %vm1677 = vmxor %vm1671, %vm1665
    %vm1678 = vmxor %vm1671, %vm1666
    %vm1679 = vmxor %vm1672, %vm1667
    %vm1680 = vmxor %vm1672, %vm1668
    %v1681 = vsel %vm1673, %v1613, %v1597
    %v1682 = vsel %vm1674, %v1614, %v1598
    %v1683 = vsel %vm1675, %v1615, %v1599
    %v1684 = vsel %vm1676, %v1616, %v1600
    %v1685 = vsel %vm1677, %v1617, %v1601
    %v1686 = vsel %vm1678, %v1618, %v1602
    %v1687 = vsel %vm1679, %v1619, %v1603
    %v1688 = vsel %vm1680, %v1620, %v1604
    %v1689 = vsel %vm1673, %v1621, %v1605
    %v1690 = vsel %vm1674, %v1622, %v1606
    %v1691 = vsel %vm1675, %v1623, %v1607
    %v1692 = vsel %vm1676, %v1624, %v1608
    %v1693 = vsel %vm1677, %v1625, %v1609
    %v1694 = vsel %vm1678, %v1626, %v1610
    %v1695 = vsel %vm1679, %v1627, %v1611
    %v1696 = vsel %vm1680, %v1628, %v1612
    %v1697 = vrot.slane %v1681, 4
    %v1698 = vrot.slane %v1682, 4
    %v1699 = vrot.slane %v1683, 4
    %v1700 = vrot.slane %v1684, 4
    %v1701 = vrot.slane %v1685, 4
    %v1702 = vrot.slane %v1686, 4
    %v1703 = vrot.slane %v1687, 4
    %v1704 = vrot.slane %v1688, 4
    %v1705 = vsel %vm612, %v1701, %v1703
    %v1706 = vsel %vm612, %v1702, %v1704
    %v1707 = vsel %vm612, %v1699, %v1701
    %v1708 = vsel %vm612, %v1700, %v1702
    %v1709 = vsel %vm612, %v1697, %v1699
    %v1710 = vsel %vm612, %v1698, %v1700
    %v1711 = vsel %vm612, %v1703, %v1697
    %v1712 = vsel %vm612, %v1704, %v1698
    %v1713 = vsel %vm600, %v1709, %v1711
    %v1714 = vsel %vm600, %v1710, %v1712
    %v1715 = vsel %vm601, %v1707, %v1709
    %v1716 = vsel %vm601, %v1708, %v1710
    %v1717 = vsel %vm602, %v1705, %v1707
    %v1718 = vsel %vm602, %v1706, %v1708
    %v1719 = vsel %vm603, %v1711, %v1705
    %v1720 = vsel %vm603, %v1712, %v1706
    %v1721 = vrot.slane %v1689, 4
    %v1722 = vrot.slane %v1690, 4
    %v1723 = vrot.slane %v1691, 4
    %v1724 = vrot.slane %v1692, 4
    %v1725 = vrot.slane %v1693, 4
    %v1726 = vrot.slane %v1694, 4
    %v1727 = vrot.slane %v1695, 4
    %v1728 = vrot.slane %v1696, 4
    %v1729 = vsel %vm612, %v1725, %v1727
    %v1730 = vsel %vm612, %v1726, %v1728
    %v1731 = vsel %vm612, %v1723, %v1725
    %v1732 = vsel %vm612, %v1724, %v1726
    %v1733 = vsel %vm612, %v1721, %v1723
    %v1734 = vsel %vm612, %v1722, %v1724
    %v1735 = vsel %vm612, %v1727, %v1721
    %v1736 = vsel %vm612, %v1728, %v1722
    %v1737 = vsel %vm600, %v1733, %v1735
    %v1738 = vsel %vm600, %v1734, %v1736
    %v1739 = vsel %vm601, %v1731, %v1733
    %v1740 = vsel %vm601, %v1732, %v1734
    %v1741 = vsel %vm602, %v1729, %v1731
    %v1742 = vsel %vm602, %v1730, %v1732
    %v1743 = vsel %vm603, %v1735, %v1729
    %v1744 = vsel %vm603, %v1736, %v1730
    %vm1745 = vcmp.lt.f32.partialorder %v1681, %v1713
    %vm1746 = vcmp.lt.f32.partialorder %v1682, %v1714
    %vm1747 = vcmp.lt.f32.partialorder %v1683, %v1715
    %vm1748 = vcmp.lt.f32.partialorder %v1684, %v1716
    %vm1749 = vcmp.lt.f32.partialorder %v1685, %v1717
    %vm1750 = vcmp.lt.f32.partialorder %v1686, %v1718
    %vm1751 = vcmp.lt.f32.partialorder %v1687, %v1719
    %vm1752 = vcmp.lt.f32.partialorder %v1688, %v1720
    %vm1753 = vcmp.eq.f32.partialorder %v1681, %v1713
    %vm1754 = vcmp.eq.f32.partialorder %v1682, %v1714
    %vm1755 = vcmp.eq.f32.partialorder %v1683, %v1715
    %vm1756 = vcmp.eq.f32.partialorder %v1684, %v1716
    %vm1757 = vcmp.eq.f32.partialorder %v1685, %v1717
    %vm1758 = vcmp.eq.f32.partialorder %v1686, %v1718
    %vm1759 = vcmp.eq.f32.partialorder %v1687, %v1719
    %vm1760 = vcmp.eq.f32.partialorder %v1688, %v1720
    %vm1761 = vcmp.lt.s32.totalorder %v1689, %v1737
    %vm1762 = vcmp.lt.s32.totalorder %v1690, %v1738
    %vm1763 = vcmp.lt.s32.totalorder %v1691, %v1739
    %vm1764 = vcmp.lt.s32.totalorder %v1692, %v1740
    %vm1765 = vcmp.lt.s32.totalorder %v1693, %v1741
    %vm1766 = vcmp.lt.s32.totalorder %v1694, %v1742
    %vm1767 = vcmp.lt.s32.totalorder %v1695, %v1743
    %vm1768 = vcmp.lt.s32.totalorder %v1696, %v1744
    %vm1769 = vmand %vm1753, %vm1761
    %vm1770 = vmand %vm1754, %vm1762
    %vm1771 = vmand %vm1755, %vm1763
    %vm1772 = vmand %vm1756, %vm1764
    %vm1773 = vmand %vm1757, %vm1765
    %vm1774 = vmand %vm1758, %vm1766
    %vm1775 = vmand %vm1759, %vm1767
    %vm1776 = vmand %vm1760, %vm1768
    %vm1777 = vmor %vm1745, %vm1769
    %vm1778 = vmor %vm1746, %vm1770
    %vm1779 = vmor %vm1747, %vm1771
    %vm1780 = vmor %vm1748, %vm1772
    %vm1781 = vmor %vm1749, %vm1773
    %vm1782 = vmor %vm1750, %vm1774
    %vm1783 = vmor %vm1751, %vm1775
    %vm1784 = vmor %vm1752, %vm1776
    %vm1785 = vmxor %vm600, %vm1581
    %vm1786 = vmxor %vm601, %vm1582
    %vm1787 = vmxor %vm602, %vm1583
    %vm1788 = vmxor %vm603, %vm1584
    %vm1789 = vmxor %vm1785, %vm1777
    %vm1790 = vmxor %vm1785, %vm1778
    %vm1791 = vmxor %vm1786, %vm1779
    %vm1792 = vmxor %vm1786, %vm1780
    %vm1793 = vmxor %vm1787, %vm1781
    %vm1794 = vmxor %vm1787, %vm1782
    %vm1795 = vmxor %vm1788, %vm1783
    %vm1796 = vmxor %vm1788, %vm1784
    %v1797 = vsel %vm1789, %v1713, %v1681
    %v1798 = vsel %vm1790, %v1714, %v1682
    %v1799 = vsel %vm1791, %v1715, %v1683
    %v1800 = vsel %vm1792, %v1716, %v1684
    %v1801 = vsel %vm1793, %v1717, %v1685
    %v1802 = vsel %vm1794, %v1718, %v1686
    %v1803 = vsel %vm1795, %v1719, %v1687
    %v1804 = vsel %vm1796, %v1720, %v1688
    %v1805 = vsel %vm1789, %v1737, %v1689
    %v1806 = vsel %vm1790, %v1738, %v1690
    %v1807 = vsel %vm1791, %v1739, %v1691
    %v1808 = vsel %vm1792, %v1740, %v1692
    %v1809 = vsel %vm1793, %v1741, %v1693
    %v1810 = vsel %vm1794, %v1742, %v1694
    %v1811 = vsel %vm1795, %v1743, %v1695
    %v1812 = vsel %vm1796, %v1744, %v1696
    %v1813 = vrot.slane %v1797, 2
    %v1814 = vrot.slane %v1798, 2
    %v1815 = vrot.slane %v1799, 2
    %v1816 = vrot.slane %v1800, 2
    %v1817 = vrot.slane %v1801, 2
    %v1818 = vrot.slane %v1802, 2
    %v1819 = vrot.slane %v1803, 2
    %v1820 = vrot.slane %v1804, 2
    %v1821 = vsel %vm302, %v1817, %v1819
    %v1822 = vsel %vm302, %v1818, %v1820
    %v1823 = vsel %vm302, %v1815, %v1817
    %v1824 = vsel %vm302, %v1816, %v1818
    %v1825 = vsel %vm302, %v1813, %v1815
    %v1826 = vsel %vm302, %v1814, %v1816
    %v1827 = vsel %vm302, %v1819, %v1813
    %v1828 = vsel %vm302, %v1820, %v1814
    %v1829 = vrot.slane %v1797, 6
    %v1830 = vrot.slane %v1798, 6
    %v1831 = vrot.slane %v1799, 6
    %v1832 = vrot.slane %v1800, 6
    %v1833 = vrot.slane %v1801, 6
    %v1834 = vrot.slane %v1802, 6
    %v1835 = vrot.slane %v1803, 6
    %v1836 = vrot.slane %v1804, 6
    %v1837 = vsel %vm319, %v1833, %v1835
    %v1838 = vsel %vm319, %v1834, %v1836
    %v1839 = vsel %vm319, %v1831, %v1833
    %v1840 = vsel %vm319, %v1832, %v1834
    %v1841 = vsel %vm319, %v1829, %v1831
    %v1842 = vsel %vm319, %v1830, %v1832
    %v1843 = vsel %vm319, %v1835, %v1829
    %v1844 = vsel %vm319, %v1836, %v1830
    %v1845 = vsel %vm290, %v1825, %v1843
    %v1846 = vsel %vm290, %v1826, %v1844
    %v1847 = vsel %vm291, %v1823, %v1841
    %v1848 = vsel %vm291, %v1824, %v1842
    %v1849 = vsel %vm292, %v1821, %v1839
    %v1850 = vsel %vm292, %v1822, %v1840
    %v1851 = vsel %vm293, %v1827, %v1837
    %v1852 = vsel %vm293, %v1828, %v1838
    %v1853 = vrot.slane %v1805, 2
    %v1854 = vrot.slane %v1806, 2
    %v1855 = vrot.slane %v1807, 2
    %v1856 = vrot.slane %v1808, 2
    %v1857 = vrot.slane %v1809, 2
    %v1858 = vrot.slane %v1810, 2
    %v1859 = vrot.slane %v1811, 2
    %v1860 = vrot.slane %v1812, 2
    %v1861 = vsel %vm302, %v1857, %v1859
    %v1862 = vsel %vm302, %v1858, %v1860
    %v1863 = vsel %vm302, %v1855, %v1857
    %v1864 = vsel %vm302, %v1856, %v1858
    %v1865 = vsel %vm302, %v1853, %v1855
    %v1866 = vsel %vm302, %v1854, %v1856
    %v1867 = vsel %vm302, %v1859, %v1853
    %v1868 = vsel %vm302, %v1860, %v1854
    %v1869 = vrot.slane %v1805, 6
    %v1870 = vrot.slane %v1806, 6
    %v1871 = vrot.slane %v1807, 6
    %v1872 = vrot.slane %v1808, 6
    %v1873 = vrot.slane %v1809, 6
    %v1874 = vrot.slane %v1810, 6
    %v1875 = vrot.slane %v1811, 6
    %v1876 = vrot.slane %v1812, 6
    %v1877 = vsel %vm319, %v1873, %v1875
    %v1878 = vsel %vm319, %v1874, %v1876
    %v1879 = vsel %vm319, %v1871, %v1873
    %v1880 = vsel %vm319, %v1872, %v1874
    %v1881 = vsel %vm319, %v1869, %v1871
    %v1882 = vsel %vm319, %v1870, %v1872
    %v1883 = vsel %vm319, %v1875, %v1869
    %v1884 = vsel %vm319, %v1876, %v1870
    %v1885 = vsel %vm290, %v1865, %v1883
    %v1886 = vsel %vm290, %v1866, %v1884
    %v1887 = vsel %vm291, %v1863, %v1881
    %v1888 = vsel %vm291, %v1864, %v1882
    %v1889 = vsel %vm292, %v1861, %v1879
    %v1890 = vsel %vm292, %v1862, %v1880
    %v1891 = vsel %vm293, %v1867, %v1877
    %v1892 = vsel %vm293, %v1868, %v1878
    %vm1893 = vcmp.lt.f32.partialorder %v1797, %v1845
    %vm1894 = vcmp.lt.f32.partialorder %v1798, %v1846
    %vm1895 = vcmp.lt.f32.partialorder %v1799, %v1847
    %vm1896 = vcmp.lt.f32.partialorder %v1800, %v1848
    %vm1897 = vcmp.lt.f32.partialorder %v1801, %v1849
    %vm1898 = vcmp.lt.f32.partialorder %v1802, %v1850
    %vm1899 = vcmp.lt.f32.partialorder %v1803, %v1851
    %vm1900 = vcmp.lt.f32.partialorder %v1804, %v1852
    %vm1901 = vcmp.eq.f32.partialorder %v1797, %v1845
    %vm1902 = vcmp.eq.f32.partialorder %v1798, %v1846
    %vm1903 = vcmp.eq.f32.partialorder %v1799, %v1847
    %vm1904 = vcmp.eq.f32.partialorder %v1800, %v1848
    %vm1905 = vcmp.eq.f32.partialorder %v1801, %v1849
    %vm1906 = vcmp.eq.f32.partialorder %v1802, %v1850
    %vm1907 = vcmp.eq.f32.partialorder %v1803, %v1851
    %vm1908 = vcmp.eq.f32.partialorder %v1804, %v1852
    %vm1909 = vcmp.lt.s32.totalorder %v1805, %v1885
    %vm1910 = vcmp.lt.s32.totalorder %v1806, %v1886
    %vm1911 = vcmp.lt.s32.totalorder %v1807, %v1887
    %vm1912 = vcmp.lt.s32.totalorder %v1808, %v1888
    %vm1913 = vcmp.lt.s32.totalorder %v1809, %v1889
    %vm1914 = vcmp.lt.s32.totalorder %v1810, %v1890
    %vm1915 = vcmp.lt.s32.totalorder %v1811, %v1891
    %vm1916 = vcmp.lt.s32.totalorder %v1812, %v1892
    %vm1917 = vmand %vm1901, %vm1909
    %vm1918 = vmand %vm1902, %vm1910
    %vm1919 = vmand %vm1903, %vm1911
    %vm1920 = vmand %vm1904, %vm1912
    %vm1921 = vmand %vm1905, %vm1913
    %vm1922 = vmand %vm1906, %vm1914
    %vm1923 = vmand %vm1907, %vm1915
    %vm1924 = vmand %vm1908, %vm1916
    %vm1925 = vmor %vm1893, %vm1917
    %vm1926 = vmor %vm1894, %vm1918
    %vm1927 = vmor %vm1895, %vm1919
    %vm1928 = vmor %vm1896, %vm1920
    %vm1929 = vmor %vm1897, %vm1921
    %vm1930 = vmor %vm1898, %vm1922
    %vm1931 = vmor %vm1899, %vm1923
    %vm1932 = vmor %vm1900, %vm1924
    %vm1933 = vmxor %vm290, %vm1581
    %vm1934 = vmxor %vm291, %vm1582
    %vm1935 = vmxor %vm292, %vm1583
    %vm1936 = vmxor %vm293, %vm1584
    %vm1937 = vmxor %vm1933, %vm1925
    %vm1938 = vmxor %vm1933, %vm1926
    %vm1939 = vmxor %vm1934, %vm1927
    %vm1940 = vmxor %vm1934, %vm1928
    %vm1941 = vmxor %vm1935, %vm1929
    %vm1942 = vmxor %vm1935, %vm1930
    %vm1943 = vmxor %vm1936, %vm1931
    %vm1944 = vmxor %vm1936, %vm1932
    %v1945 = vsel %vm1937, %v1845, %v1797
    %v1946 = vsel %vm1938, %v1846, %v1798
    %v1947 = vsel %vm1939, %v1847, %v1799
    %v1948 = vsel %vm1940, %v1848, %v1800
    %v1949 = vsel %vm1941, %v1849, %v1801
    %v1950 = vsel %vm1942, %v1850, %v1802
    %v1951 = vsel %vm1943, %v1851, %v1803
    %v1952 = vsel %vm1944, %v1852, %v1804
    %v1953 = vsel %vm1937, %v1885, %v1805
    %v1954 = vsel %vm1938, %v1886, %v1806
    %v1955 = vsel %vm1939, %v1887, %v1807
    %v1956 = vsel %vm1940, %v1888, %v1808
    %v1957 = vsel %vm1941, %v1889, %v1809
    %v1958 = vsel %vm1942, %v1890, %v1810
    %v1959 = vsel %vm1943, %v1891, %v1811
    %v1960 = vsel %vm1944, %v1892, %v1812
    %v1961 = vrot.slane %v1945, 1
    %v1962 = vrot.slane %v1946, 1
    %v1963 = vrot.slane %v1947, 1
    %v1964 = vrot.slane %v1948, 1
    %v1965 = vrot.slane %v1949, 1
    %v1966 = vrot.slane %v1950, 1
    %v1967 = vrot.slane %v1951, 1
    %v1968 = vrot.slane %v1952, 1
    %v1969 = vsel %vm164, %v1965, %v1967
    %v1970 = vsel %vm164, %v1966, %v1968
    %v1971 = vsel %vm164, %v1963, %v1965
    %v1972 = vsel %vm164, %v1964, %v1966
    %v1973 = vsel %vm164, %v1961, %v1963
    %v1974 = vsel %vm164, %v1962, %v1964
    %v1975 = vsel %vm164, %v1967, %v1961
    %v1976 = vsel %vm164, %v1968, %v1962
    %v1977 = vrot.slane %v1945, 7
    %v1978 = vrot.slane %v1946, 7
    %v1979 = vrot.slane %v1947, 7
    %v1980 = vrot.slane %v1948, 7
    %v1981 = vrot.slane %v1949, 7
    %v1982 = vrot.slane %v1950, 7
    %v1983 = vrot.slane %v1951, 7
    %v1984 = vrot.slane %v1952, 7
    %v1985 = vsel %vm181, %v1981, %v1983
    %v1986 = vsel %vm181, %v1982, %v1984
    %v1987 = vsel %vm181, %v1979, %v1981
    %v1988 = vsel %vm181, %v1980, %v1982
    %v1989 = vsel %vm181, %v1977, %v1979
    %v1990 = vsel %vm181, %v1978, %v1980
    %v1991 = vsel %vm181, %v1983, %v1977
    %v1992 = vsel %vm181, %v1984, %v1978
    %v1993 = vsel %vm152, %v1973, %v1991
    %v1994 = vsel %vm152, %v1974, %v1992
    %v1995 = vsel %vm153, %v1971, %v1989
    %v1996 = vsel %vm153, %v1972, %v1990
    %v1997 = vsel %vm154, %v1969, %v1987
    %v1998 = vsel %vm154, %v1970, %v1988
    %v1999 = vsel %vm155, %v1975, %v1985
    %v2000 = vsel %vm155, %v1976, %v1986
    %v2001 = vrot.slane %v1953, 1
    %v2002 = vrot.slane %v1954, 1
    %v2003 = vrot.slane %v1955, 1
    %v2004 = vrot.slane %v1956, 1
    %v2005 = vrot.slane %v1957, 1
    %v2006 = vrot.slane %v1958, 1
    %v2007 = vrot.slane %v1959, 1
    %v2008 = vrot.slane %v1960, 1
    %v2009 = vsel %vm164, %v2005, %v2007
    %v2010 = vsel %vm164, %v2006, %v2008
    %v2011 = vsel %vm164, %v2003, %v2005
    %v2012 = vsel %vm164, %v2004, %v2006
    %v2013 = vsel %vm164, %v2001, %v2003
    %v2014 = vsel %vm164, %v2002, %v2004
    %v2015 = vsel %vm164, %v2007, %v2001
    %v2016 = vsel %vm164, %v2008, %v2002
    %v2017 = vrot.slane %v1953, 7
    %v2018 = vrot.slane %v1954, 7
    %v2019 = vrot.slane %v1955, 7
    %v2020 = vrot.slane %v1956, 7
    %v2021 = vrot.slane %v1957, 7
    %v2022 = vrot.slane %v1958, 7
    %v2023 = vrot.slane %v1959, 7
    %v2024 = vrot.slane %v1960, 7
    %v2025 = vsel %vm181, %v2021, %v2023
    %v2026 = vsel %vm181, %v2022, %v2024
    %v2027 = vsel %vm181, %v2019, %v2021
    %v2028 = vsel %vm181, %v2020, %v2022
    %v2029 = vsel %vm181, %v2017, %v2019
    %v2030 = vsel %vm181, %v2018, %v2020
    %v2031 = vsel %vm181, %v2023, %v2017
    %v2032 = vsel %vm181, %v2024, %v2018
    %v2033 = vsel %vm152, %v2013, %v2031
    %v2034 = vsel %vm152, %v2014, %v2032
    %v2035 = vsel %vm153, %v2011, %v2029
    %v2036 = vsel %vm153, %v2012, %v2030
    %v2037 = vsel %vm154, %v2009, %v2027
    %v2038 = vsel %vm154, %v2010, %v2028
    %v2039 = vsel %vm155, %v2015, %v2025
    %v2040 = vsel %vm155, %v2016, %v2026
    %vm2041 = vcmp.lt.f32.partialorder %v1945, %v1993
    %vm2042 = vcmp.lt.f32.partialorder %v1946, %v1994
    %vm2043 = vcmp.lt.f32.partialorder %v1947, %v1995
    %vm2044 = vcmp.lt.f32.partialorder %v1948, %v1996
    %vm2045 = vcmp.lt.f32.partialorder %v1949, %v1997
    %vm2046 = vcmp.lt.f32.partialorder %v1950, %v1998
    %vm2047 = vcmp.lt.f32.partialorder %v1951, %v1999
    %vm2048 = vcmp.lt.f32.partialorder %v1952, %v2000
    %vm2049 = vcmp.eq.f32.partialorder %v1945, %v1993
    %vm2050 = vcmp.eq.f32.partialorder %v1946, %v1994
    %vm2051 = vcmp.eq.f32.partialorder %v1947, %v1995
    %vm2052 = vcmp.eq.f32.partialorder %v1948, %v1996
    %vm2053 = vcmp.eq.f32.partialorder %v1949, %v1997
    %vm2054 = vcmp.eq.f32.partialorder %v1950, %v1998
    %vm2055 = vcmp.eq.f32.partialorder %v1951, %v1999
    %vm2056 = vcmp.eq.f32.partialorder %v1952, %v2000
    %vm2057 = vcmp.lt.s32.totalorder %v1953, %v2033
    %vm2058 = vcmp.lt.s32.totalorder %v1954, %v2034
    %vm2059 = vcmp.lt.s32.totalorder %v1955, %v2035
    %vm2060 = vcmp.lt.s32.totalorder %v1956, %v2036
    %vm2061 = vcmp.lt.s32.totalorder %v1957, %v2037
    %vm2062 = vcmp.lt.s32.totalorder %v1958, %v2038
    %vm2063 = vcmp.lt.s32.totalorder %v1959, %v2039
    %vm2064 = vcmp.lt.s32.totalorder %v1960, %v2040
    %vm2065 = vmand %vm2049, %vm2057
    %vm2066 = vmand %vm2050, %vm2058
    %vm2067 = vmand %vm2051, %vm2059
    %vm2068 = vmand %vm2052, %vm2060
    %vm2069 = vmand %vm2053, %vm2061
    %vm2070 = vmand %vm2054, %vm2062
    %vm2071 = vmand %vm2055, %vm2063
    %vm2072 = vmand %vm2056, %vm2064
    %vm2073 = vmor %vm2041, %vm2065
    %vm2074 = vmor %vm2042, %vm2066
    %vm2075 = vmor %vm2043, %vm2067
    %vm2076 = vmor %vm2044, %vm2068
    %vm2077 = vmor %vm2045, %vm2069
    %vm2078 = vmor %vm2046, %vm2070
    %vm2079 = vmor %vm2047, %vm2071
    %vm2080 = vmor %vm2048, %vm2072
    %vm2081 = vmxor %vm152, %vm1581
    %vm2082 = vmxor %vm153, %vm1582
    %vm2083 = vmxor %vm154, %vm1583
    %vm2084 = vmxor %vm155, %vm1584
    %vm2085 = vmxor %vm2081, %vm2073
    %vm2086 = vmxor %vm2081, %vm2074
    %vm2087 = vmxor %vm2082, %vm2075
    %vm2088 = vmxor %vm2082, %vm2076
    %vm2089 = vmxor %vm2083, %vm2077
    %vm2090 = vmxor %vm2083, %vm2078
    %vm2091 = vmxor %vm2084, %vm2079
    %vm2092 = vmxor %vm2084, %vm2080
    %v2093 = vsel %vm2085, %v1993, %v1945
    %v2094 = vsel %vm2086, %v1994, %v1946
    %v2095 = vsel %vm2087, %v1995, %v1947
    %v2096 = vsel %vm2088, %v1996, %v1948
    %v2097 = vsel %vm2089, %v1997, %v1949
    %v2098 = vsel %vm2090, %v1998, %v1950
    %v2099 = vsel %vm2091, %v1999, %v1951
    %v2100 = vsel %vm2092, %v2000, %v1952
    %v2101 = vsel %vm2085, %v2033, %v1953
    %v2102 = vsel %vm2086, %v2034, %v1954
    %v2103 = vsel %vm2087, %v2035, %v1955
    %v2104 = vsel %vm2088, %v2036, %v1956
    %v2105 = vsel %vm2089, %v2037, %v1957
    %v2106 = vsel %vm2090, %v2038, %v1958
    %v2107 = vsel %vm2091, %v2039, %v1959
    %v2108 = vsel %vm2092, %v2040, %v1960
    %v2109 = vsub.f32 %v2093, %v124
    %v2110 = vsub.f32 %v2094, %v125
    %v2111 = vsub.f32 %v2095, %v126
    %v2112 = vsub.f32 %v2096, %v127
    %v2113 = vsub.f32 %v2097, %v128
    %v2114 = vsub.f32 %v2098, %v129
    %v2115 = vsub.f32 %v2099, %v130
    %v2116 = vsub.f32 %v2100, %v131
    %2117 = vst [vmem:[#allocation7] sm:$0xff] %v2109
    %2118 = vst [vmem:[#allocation7 + $0x8] sm:$0xff] %v2110
    %2119 = vst [vmem:[#allocation7 + $0x10] sm:$0xff] %v2111
    %2120 = vst [vmem:[#allocation7 + $0x18] sm:$0xff] %v2112
    %2121 = vst [vmem:[#allocation7 + $0x20] sm:$0xff] %v2113
    %2122 = vst [vmem:[#allocation7 + $0x28] sm:$0xff] %v2114
    %2123 = vst [vmem:[#allocation7 + $0x30] sm:$0xff] %v2115
    %2124 = vst [vmem:[#allocation7 + $0x38] sm:$0xff] %v2116
    %2125 = vst [vmem:[#allocation8] sm:$0xff] %v2101
    %2126 = vst [vmem:[#allocation8 + $0x8] sm:$0xff] %v2102
    %2127 = vst [vmem:[#allocation8 + $0x10] sm:$0xff] %v2103
    %2128 = vst [vmem:[#allocation8 + $0x18] sm:$0xff] %v2104
    %2129 = vst [vmem:[#allocation8 + $0x20] sm:$0xff] %v2105
    %2130 = vst [vmem:[#allocation8 + $0x28] sm:$0xff] %v2106
    %2131 = vst [vmem:[#allocation8 + $0x30] sm:$0xff] %v2107
    %2132 = vst [vmem:[#allocation8 + $0x38] sm:$0xff] %v2108
    // Predicated region
    $region18: #{tpu_custom_call.1} parent=1 // pred_check
      _
    $region19: #{tpu_custom_call.1} parent=1 // pred_check_branch
      %2134 = sbr.rel (0) target = $region21
    $region20: #{tpu_custom_call.1} parent=1 // pred_region
      %s2136 = ssub.s32 1024, 1024
      %2137 = vsyncadd [#allocation4], %s2136
      %s2138 = sshll.u32 [#allocation7], 4
      %s2139 = int_to_ptr.vmem [resolvable:$true] %s2138
      %2144 = dma.vmem_to_hbm [thread:$0]  %s2139, 1024, %s2, [#allocation4], 256, 256, 16
    $region21: #{tpu_custom_call.1} parent=1 // pred_fallthru
      _
    // Predicated region
    $region22: #{tpu_custom_call.1} parent=1 // pred_check
      _
    $region23: #{tpu_custom_call.1} parent=1 // pred_check_branch
      %2146 = sbr.rel (0) target = $region25
    $region24: #{tpu_custom_call.1} parent=1 // pred_region
      %s2148 = ssub.s32 1024, 1024
      %2149 = vsyncadd [#allocation9], %s2148
      %s2150 = sshll.u32 [#allocation8], 4
      %s2151 = int_to_ptr.vmem [resolvable:$true] %s2150
      %2156 = dma.vmem_to_hbm [thread:$0]  %s2151, 1024, %s3, [#allocation9], 256, 256, 16
    $region25: #{tpu_custom_call.1} parent=1 // pred_fallthru
      _
    // Predicated region
    $region26: #{tpu_custom_call.1} parent=1 // pred_check
      _
    $region27: #{tpu_custom_call.1} parent=1 // pred_check_branch
      %2158 = sbr.rel (0) target = $region29
    $region28: #{tpu_custom_call.1} parent=1 // pred_region
      %2159 = dma.done [#allocation4], 1024
    $region29: #{tpu_custom_call.1} parent=1 // pred_fallthru
      _
    // Predicated region
    $region30: #{tpu_custom_call.1} parent=1 // pred_check
      _
    $region31: #{tpu_custom_call.1} parent=1 // pred_check_branch
      %2161 = sbr.rel (0) target = $region33
    $region32: #{tpu_custom_call.1} parent=1 // pred_region
      %2162 = dma.done [#allocation9], 1024
    $region33: #{tpu_custom_call.1} parent=1 // pred_fallthru
      _
    %2163 = vsyncpa [#allocation3], 1
    %2164 = vsyncpa [#allocation6], 1
    %2165 = vsyncpa [#allocation4], 1
    %2166 = vsyncpa [#allocation9], 1

</llo_original>
